<compile_context>
chip_gen: v6e
topology: v6e:2x2x1
jax: 0.10.0
libtpu: 0.0.40
codegen_flags: <defaults>
</compile_context>

<pallas_src>
import functools

import jax
import jax.numpy as jnp
from jax.experimental import pallas as pl
from jax.experimental.pallas import tpu as pltpu


def _news_encoder_kernel(tanh_dtype,
                         wv_ref, lens_ref, cat_ref, sub_ref,
                         wstack_ref, bc_ref, wa1_ref, ba1_ref,
                         wa2_ref, ba2_ref, wft_ref, wfc_ref, wfs_ref, bf_ref,
                         out_ref):
    ROWS, E = wv_ref.shape          # ROWS = IB * T_pad flattened title rows
    IB, D = cat_ref.shape           # items per block, news_dim
    T = ROWS // IB                  # padded title length (multiple of 8)

    x = wv_ref[...]                                         # (ROWS, E) bf16

    # position-in-item of each flat row (pure sublane split/merge, no int mod)
    t_pos = jax.lax.broadcasted_iota(jnp.int32, (IB, T, 1), 1).reshape(ROWS, 1)
    is_first = t_pos == 0
    is_last = t_pos == T - 1

    # Conv1d(k=3, padding=1): one MXU pass with the three taps stacked on the
    # output dim; neighbour contributions are XLU sublane rolls of the f32
    # GEMM output, with rows that wrapped across an item boundary zeroed
    # (== the conv zero padding).  No f32 copy of x, no input concat.
    z = jnp.dot(x, wstack_ref[...], preferred_element_type=jnp.float32)  # (ROWS, 3D)
    y = z[:, D:2 * D] + bc_ref[...]                                      # centre tap
    y = y + jnp.where(is_first, 0.0, pltpu.roll(z[:, :D], 1, axis=0))    # x[t-1] tap
    y = y + jnp.where(is_last, 0.0, pltpu.roll(z[:, 2 * D:], ROWS - 1, axis=0))  # x[t+1]

    # AttentionPooling: fc1 -> tanh -> (VPU mul + XLU lane-reduce) logit
    h = (jnp.dot(y.astype(jnp.bfloat16), wa1_ref[...],
                 preferred_element_type=jnp.float32) + ba1_ref[...])     # (ROWS, Q) f32
    e = jnp.tanh(h.astype(tanh_dtype)).astype(jnp.float32)               # bf16 EUP on v6e/v7x
    logit = (jnp.sum(e * wa2_ref[...], axis=-1, keepdims=True)
             + ba2_ref[...])                                             # (ROWS, 1), no MXU

    # per-item masked softmax over the (sublane) word axis; mask rebuilt from
    # per-item valid lengths.
    logit3 = logit.reshape(IB, T, 1)
    t_iota = jax.lax.broadcasted_iota(jnp.int32, (IB, T, 1), 1)
    m3 = (t_iota < lens_ref[...].reshape(IB, 1, 1)).astype(jnp.float32)
    lmax = jnp.max(jnp.where(m3 > 0, logit3, -1e30), axis=1, keepdims=True)
    lmax = jnp.maximum(lmax, 0.0)                          # all-masked guard
    alpha = jnp.exp(logit3 - lmax) * m3
    alpha = alpha / (jnp.sum(alpha, axis=1, keepdims=True) + 1e-8)
    title = jnp.sum(y.reshape(IB, T, D) * alpha, axis=1)   # (IB, D) f32

    # final_dense over concat(title, cat, sub) == three accumulated GEMMs.
    out = (jnp.dot(title.astype(jnp.bfloat16), wft_ref[...],
                   preferred_element_type=jnp.float32)
           + jnp.dot(cat_ref[...], wfc_ref[...], preferred_element_type=jnp.float32)
           + jnp.dot(sub_ref[...], wfs_ref[...], preferred_element_type=jnp.float32)
           + bf_ref[...])                                  # (IB, D) f32
    out_ref[...] = out.astype(out_ref.dtype)


def news_encoder_pallas(word_vecs, lens, cat_emb, sub_emb, params, *,
                        target_rows=1024, min_grid_steps=8,
                        out_dtype=jnp.float32):
    B, T, E = word_vecs.shape
    D = params["conv_w"].shape[0]
    Q = params["attn_w1"].shape[0]
    f32, bf16 = jnp.float32, jnp.bfloat16

    # --- block geometry ------------------------------------------------------
    T_pad = ((T + 7) // 8) * 8                       # sublane-aligned title len
    ib_rows = max(8, ((target_rows // T_pad) // 8) * 8)          # rows target
    ib_steps = max(8, ((-(-B // min_grid_steps)) + 7) // 8 * 8)  # keep >=~8 steps
    IB = min(ib_rows, ib_steps)                      # items / step, multiple of 8
    B_pad = -(-B // IB) * IB
    NB = B_pad // IB
    if NB % 2 == 1 and NB > 1:                       # even grid for megacore split
        B_pad += IB
        NB += 1
    ROWS = IB * T_pad                                # rows per GEMM block

    # --- layout plumbing (plain JAX, fuses under jit; pads only when needed) --
    wv = word_vecs.astype(bf16)                      # no-op if table stored bf16
    if T_pad != T or B_pad != B:
        wv = jnp.pad(wv, ((0, B_pad - B), (0, T_pad - T), (0, 0)))
    wv_flat = wv.reshape(B_pad * T_pad, E)

    lens_i = lens.reshape(B, 1).astype(jnp.int32)
    cat = cat_emb.astype(bf16)
    sub = sub_emb.astype(bf16)
    if B_pad != B:
        lens_i = jnp.pad(lens_i, ((0, B_pad - B), (0, 0)))
        cat = jnp.pad(cat, ((0, B_pad - B), (0, 0)))
        sub = jnp.pad(sub, ((0, B_pad - B), (0, 0)))

    cw = params["conv_w"]                                          # (D, E, 3)
    wstack = jnp.concatenate([cw[:, :, 0].T, cw[:, :, 1].T, cw[:, :, 2].T],
                             axis=1).astype(bf16)                  # (E, 3D)
    bconv = params["conv_b"].reshape(1, D).astype(f32)
    wa1 = params["attn_w1"].T.astype(bf16)                         # (D, Q)
    ba1 = params["attn_b1"].reshape(1, Q).astype(f32)
    wa2 = params["attn_w2"].reshape(1, Q).astype(f32)              # VPU row, f32
    ba2 = params["attn_b2"].reshape(1, 1).astype(f32)
    wf = params["final_w"].T                                       # (3D, D)
    wft = wf[:D].astype(bf16)
    wfc = wf[D:2 * D].astype(bf16)
    wfs = wf[2 * D:].astype(bf16)
    bfin = params["final_b"].reshape(1, D).astype(f32)

    # tanh in bf16 only on chips with a bf16 EUP (v6e / v7x); keep f32 on v5*.
    try:
        kind = jax.devices()[0].device_kind.lower()
    except Exception:  # pragma: no cover - defensive
        kind = ""
    tanh_dtype = jnp.float32 if "v5" in kind else jnp.bfloat16

    # explicit VMEM budget (double-buffered wv block + in-body f32 working set
    # + resident weights), 2x headroom, clamped to stay safe on v5e/v7x.
    vmem_est = (2 * ROWS * E * 2                      # wv block, x2 buffers, bf16
                + ROWS * 3 * D * 4                    # z (f32)
                + 4 * ROWS * max(D, Q) * 4            # y / rolls / e / alpha
                + 2 * (3 * E * D + D * Q + 3 * D * D) * 2   # resident bf16 weights
                + 4 * IB * D * 8)                     # cat/sub/out buffers
    vmem_limit = int(min(max(vmem_est * 2, 16 * 2**20), 48 * 2**20))

    def const_spec(a):                   # weights: constant index_map -> resident
        nd = a.ndim
        return pl.BlockSpec(a.shape, lambda nb, _nd=nd: (0,) * _nd)

    kernel = functools.partial(_news_encoder_kernel, tanh_dtype)

    out = pl.pallas_call(
        kernel,
        out_shape=jax.ShapeDtypeStruct((B_pad, D), out_dtype),
        grid=(NB,),
        in_specs=[
            pl.BlockSpec((ROWS, E), lambda nb: (nb, 0)),   # word vecs (bf16)
            pl.BlockSpec((IB, 1), lambda nb: (nb, 0)),     # per-item valid length
            pl.BlockSpec((IB, D), lambda nb: (nb, 0)),     # category emb (bf16)
            pl.BlockSpec((IB, D), lambda nb: (nb, 0)),     # subcategory emb (bf16)
            const_spec(wstack), const_spec(bconv),
            const_spec(wa1), const_spec(ba1),
            const_spec(wa2), const_spec(ba2),
            const_spec(wft), const_spec(wfc), const_spec(wfs), const_spec(bfin),
        ],
        out_specs=pl.BlockSpec((IB, D), lambda nb: (nb, 0)),
        compiler_params=pltpu.CompilerParams(
            dimension_semantics=("parallel",),             # megacore split
            vmem_limit_bytes=vmem_limit),
    )(wv_flat, lens_i, cat, sub,
      wstack, bconv, wa1, ba1, wa2, ba2, wft, wfc, wfs, bfin)
    return out[:B]


def news_encoder_forward(x, mask, tables, params, num_words_title):
    """x: (B, num_words_title + 2) int32 = [title ids..., category, subcategory]."""
    title = x[:, :num_words_title]
    category = x[:, num_words_title]
    subcategory = x[:, num_words_title + 1]
    # Embedding gathers + (eval-mode identity) dropout stay plain-JAX glue.
    # TODO(synk): fuse the word-embedding gather into the kernel (scalar-prefetched
    # title ids + manual DMA row gather) to drop the HBM round trip on word_vecs.
    word_vecs = tables["word"][title]                # (B, T, E)
    cat_emb = tables["category"][category]           # (B, D)
    sub_emb = tables["subcategory"][subcategory]     # (B, D)
    if mask is None:
        lens = jnp.full((x.shape[0],), num_words_title, jnp.int32)
    else:
        # TODO(synk): arbitrary (non-prefix) per-token masks would need the dense
        # mask path; LSTUR title masks are length-prefix so lengths suffice.
        lens = jnp.sum(mask > 0, axis=-1).astype(jnp.int32)
    return news_encoder_pallas(word_vecs, lens, cat_emb, sub_emb, params)


def reference_forward(x, mask, tables, params, num_words_title):
    """Pure-JAX (f32) mirror of the PyTorch forward, for a correctness check."""
    title = x[:, :num_words_title]
    word_vecs = tables["word"][title]                              # (B, T, E)
    wv = jnp.transpose(word_vecs, (0, 2, 1))                       # NCW
    y = jax.lax.conv_general_dilated(
        wv, params["conv_w"], window_strides=(1,), padding=((1, 1),),
        dimension_numbers=("NCH", "OIH", "NCH"))
    y = y + params["conv_b"][None, :, None]
    y = jnp.transpose(y, (0, 2, 1))                                # (B, T, D)
    e = jnp.tanh(y @ params["attn_w1"].T + params["attn_b1"])
    logit = e @ params["attn_w2"].T + params["attn_b2"]
    alpha = jnp.exp(logit) * mask[..., None]
    alpha = alpha / (jnp.sum(alpha, axis=1, keepdims=True) + 1e-8)
    title_vec = jnp.sum(y * alpha, axis=1)                         # (B, D)
    cat_emb = tables["category"][x[:, num_words_title]]
    sub_emb = tables["subcategory"][x[:, num_words_title + 1]]
    news_repr = jnp.concatenate([title_vec, cat_emb, sub_emb], axis=1)
    return news_repr @ params["final_w"].T + params["final_b"]


if __name__ == "__main__":
    # Small but TPU-friendly sizes. category_emb_dim == news_dim, as required by
    # the module's final_dense input dim. B=32 / T=16 -> IB=8 items x 16 rows
    # = 128-row blocks, 4 grid steps (no wrapper padding needed).
    B = 32                 # batch (news items)
    T = 16                 # num_words_title
    E = 128                # word_embedding_dim
    D = 128                # news_dim (== category_emb_dim)
    Q = 128                # news_query_vector_dim
    VOCAB = 200
    NUM_CAT = 10
    NUM_SUBCAT = 20

    key = jax.random.PRNGKey(0)
    ks = jax.random.split(key, 16)

    tables = {
        "word": jax.random.normal(ks[0], (VOCAB, E), jnp.float32) * 0.1,
        # padding_idx=0 -> zero row
        "category": (jax.random.normal(ks[1], (NUM_CAT + 1, D), jnp.float32) * 0.1
                     ).at[0].set(0.0),
        "subcategory": (jax.random.normal(ks[2], (NUM_SUBCAT + 1, D), jnp.float32) * 0.1
                        ).at[0].set(0.0),
    }
    # kernel path stores the word table in bf16 (no wrapper-side cast copy).
    tables_kernel = dict(tables)
    tables_kernel["word"] = tables["word"].astype(jnp.bfloat16)

    params = {
        "conv_w": jax.random.normal(ks[3], (D, E, 3), jnp.float32) * 0.05,
        "conv_b": jax.random.normal(ks[4], (D,), jnp.float32) * 0.05,
        "attn_w1": jax.random.normal(ks[5], (Q, D), jnp.float32) * 0.05,
        "attn_b1": jax.random.normal(ks[6], (Q,), jnp.float32) * 0.05,
        "attn_w2": jax.random.normal(ks[7], (1, Q), jnp.float32) * 0.05,
        "attn_b2": jax.random.normal(ks[8], (1,), jnp.float32) * 0.05,
        "final_w": jax.random.normal(ks[9], (D, 3 * D), jnp.float32) * 0.05,
        "final_b": jax.random.normal(ks[10], (D,), jnp.float32) * 0.05,
    }

    # x = [title word ids (T), category id, subcategory id]
    title_ids = jax.random.randint(ks[11], (B, T), 0, VOCAB, jnp.int32)
    cat_ids = jax.random.randint(ks[12], (B, 1), 1, NUM_CAT + 1, jnp.int32)
    sub_ids = jax.random.randint(ks[13], (B, 1), 1, NUM_SUBCAT + 1, jnp.int32)
    x = jnp.concatenate([title_ids, cat_ids, sub_ids], axis=1)     # (B, T+2)

    # mask: first `lens[b]` title words valid (length-prefix, as in LSTUR data)
    lens = jax.random.randint(ks[14], (B, 1), 4, T + 1, jnp.int32)
    mask = (jnp.arange(T)[None, :] < lens).astype(jnp.float32)     # (B, T)

    fwd = jax.jit(news_encoder_forward, static_argnames="num_words_title")
    out = fwd(x, mask, tables_kernel, params, num_words_title=T)
    out = jax.block_until_ready(out)

    ref = reference_forward(x, mask, tables, params, T)
    assert out.shape == (B, D)
    # bf16 data path vs f32 reference: expected deviation ~1e-3, well under tol.
    assert jnp.allclose(out, ref, rtol=2e-2, atol=2e-2), "mismatch vs JAX reference"

    print("KERNEL_OK")
</pallas_src>

<mosaic_0001>
module attributes {stable_mosaic.version = 11 : i64} {
  func.func @_news_encoder_kernel(%arg0: i32, %arg1: memref<128x128xbf16, #tpu.memory_space<vmem>>, %arg2: memref<8x1xi32, #tpu.memory_space<vmem>>, %arg3: memref<8x128xbf16, #tpu.memory_space<vmem>>, %arg4: memref<8x128xbf16, #tpu.memory_space<vmem>>, %arg5: memref<128x384xbf16, #tpu.memory_space<vmem>>, %arg6: memref<1x128xf32, #tpu.memory_space<vmem>>, %arg7: memref<128x128xbf16, #tpu.memory_space<vmem>>, %arg8: memref<1x128xf32, #tpu.memory_space<vmem>>, %arg9: memref<1x128xf32, #tpu.memory_space<vmem>>, %arg10: memref<1x1xf32, #tpu.memory_space<vmem>>, %arg11: memref<128x128xbf16, #tpu.memory_space<vmem>>, %arg12: memref<128x128xbf16, #tpu.memory_space<vmem>>, %arg13: memref<128x128xbf16, #tpu.memory_space<vmem>>, %arg14: memref<1x128xf32, #tpu.memory_space<vmem>>, %arg15: memref<8x128xf32, #tpu.memory_space<vmem>>) attributes {dimension_semantics = [#tpu.dimension_semantics<parallel>], iteration_bounds = array<i64: 4>, scalar_prefetch = 0 : i64, scratch_operands = 0 : i64, tpu.core_type = #tpu.core_type<tc>, window_params = [{transform_indices = @transform_0, window_bounds = array<i64: 128, 128>}, {transform_indices = @transform_1, window_bounds = array<i64: 8, 1>}, {transform_indices = @transform_2, window_bounds = array<i64: 8, 128>}, {transform_indices = @transform_3, window_bounds = array<i64: 8, 128>}, {pipeline_mode = #tpu.pipeline_mode<synchronous>, transform_indices = @transform_4, window_bounds = array<i64: 128, 384>}, {pipeline_mode = #tpu.pipeline_mode<synchronous>, transform_indices = @transform_5, window_bounds = array<i64: 1, 128>}, {pipeline_mode = #tpu.pipeline_mode<synchronous>, transform_indices = @transform_6, window_bounds = array<i64: 128, 128>}, {pipeline_mode = #tpu.pipeline_mode<synchronous>, transform_indices = @transform_7, window_bounds = array<i64: 1, 128>}, {pipeline_mode = #tpu.pipeline_mode<synchronous>, transform_indices = @transform_8, window_bounds = array<i64: 1, 128>}, {pipeline_mode = #tpu.pipeline_mode<synchronous>, transform_indices = @transform_9, window_bounds = array<i64: 1, 1>}, {pipeline_mode = #tpu.pipeline_mode<synchronous>, transform_indices = @transform_10, window_bounds = array<i64: 128, 128>}, {pipeline_mode = #tpu.pipeline_mode<synchronous>, transform_indices = @transform_11, window_bounds = array<i64: 128, 128>}, {pipeline_mode = #tpu.pipeline_mode<synchronous>, transform_indices = @transform_12, window_bounds = array<i64: 128, 128>}, {pipeline_mode = #tpu.pipeline_mode<synchronous>, transform_indices = @transform_13, window_bounds = array<i64: 1, 128>}, {transform_indices = @transform_14, window_bounds = array<i64: 8, 128>}]} {
    %c0 = arith.constant 0 : index
    %c0_0 = arith.constant 0 : index
    %0 = vector.load %arg1[%c0, %c0_0] : memref<128x128xbf16, #tpu.memory_space<vmem>>, vector<128x128xbf16>
    %1 = tpu.iota {dimensions = array<i32: 1>} : vector<8x16x1xi32>
    %2 = vector.shape_cast %1 : vector<8x16x1xi32> to vector<128x1xi32>
    %c0_i32 = arith.constant 0 : i32
    %3 = vector.broadcast %c0_i32 : i32 to vector<128x1xi32>
    %4 = arith.cmpi eq, %2, %3 : vector<128x1xi32>
    %c15_i32 = arith.constant 15 : i32
    %5 = vector.broadcast %c15_i32 : i32 to vector<128x1xi32>
    %6 = arith.cmpi eq, %2, %5 : vector<128x1xi32>
    %c0_1 = arith.constant 0 : index
    %c0_2 = arith.constant 0 : index
    %7 = vector.load %arg5[%c0_1, %c0_2] : memref<128x384xbf16, #tpu.memory_space<vmem>>, vector<128x384xbf16>
    %cst = arith.constant dense<0.000000e+00> : vector<128x384xf32>
    %8 = tpu.matmul %0, %7, %cst {dimension_numbers = #tpu.dot_dimension_numbers<[1], [0], [0], [1], [0, 0, 1, 1], [], []>} : vector<128x128xbf16>, vector<128x384xbf16>, vector<128x384xf32> -> vector<128x384xf32>
    %9 = vector.extract_strided_slice %8 {offsets = [0, 128], sizes = [128, 128], strides = [1, 1]} : vector<128x384xf32> to vector<128x128xf32>
    %c0_3 = arith.constant 0 : index
    %c0_4 = arith.constant 0 : index
    %10 = vector.load %arg6[%c0_3, %c0_4] : memref<1x128xf32, #tpu.memory_space<vmem>>, vector<1x128xf32>
    %11 = vector.broadcast %10 : vector<1x128xf32> to vector<128x128xf32>
    %12 = arith.addf %9, %11 : vector<128x128xf32>
    %13 = vector.extract_strided_slice %8 {offsets = [0, 0], sizes = [128, 128], strides = [1, 1]} : vector<128x384xf32> to vector<128x128xf32>
    %c1_i32 = arith.constant 1 : i32
    %14 = tpu.dynamic_rotate %13 by %c1_i32 dim 0 : vector<128x128xf32>, i32 -> vector<128x128xf32>
    %cst_5 = arith.constant 0.000000e+00 : f32
    %15 = vector.shape_cast %4 : vector<128x1xi1> to vector<128x1xi1>
    %16 = vector.broadcast %15 : vector<128x1xi1> to vector<128x128xi1>
    %17 = vector.broadcast %cst_5 : f32 to vector<128x128xf32>
    %18 = arith.select %16, %17, %14 : vector<128x128xi1>, vector<128x128xf32>
    %19 = arith.addf %12, %18 : vector<128x128xf32>
    %20 = vector.extract_strided_slice %8 {offsets = [0, 256], sizes = [128, 128], strides = [1, 1]} : vector<128x384xf32> to vector<128x128xf32>
    %c127_i32 = arith.constant 127 : i32
    %21 = tpu.dynamic_rotate %20 by %c127_i32 dim 0 : vector<128x128xf32>, i32 -> vector<128x128xf32>
    %cst_6 = arith.constant 0.000000e+00 : f32
    %22 = vector.shape_cast %6 : vector<128x1xi1> to vector<128x1xi1>
    %23 = vector.broadcast %22 : vector<128x1xi1> to vector<128x128xi1>
    %24 = vector.broadcast %cst_6 : f32 to vector<128x128xf32>
    %25 = arith.select %23, %24, %21 : vector<128x128xi1>, vector<128x128xf32>
    %26 = arith.addf %19, %25 : vector<128x128xf32>
    %27 = arith.truncf %26 : vector<128x128xf32> to vector<128x128xbf16>
    %c0_7 = arith.constant 0 : index
    %c0_8 = arith.constant 0 : index
    %28 = vector.load %arg7[%c0_7, %c0_8] : memref<128x128xbf16, #tpu.memory_space<vmem>>, vector<128x128xbf16>
    %cst_9 = arith.constant dense<0.000000e+00> : vector<128x128xf32>
    %29 = tpu.matmul %27, %28, %cst_9 {dimension_numbers = #tpu.dot_dimension_numbers<[1], [0], [0], [1], [0, 0, 1, 1], [], []>} : vector<128x128xbf16>, vector<128x128xbf16>, vector<128x128xf32> -> vector<128x128xf32>
    %c0_10 = arith.constant 0 : index
    %c0_11 = arith.constant 0 : index
    %30 = vector.load %arg8[%c0_10, %c0_11] : memref<1x128xf32, #tpu.memory_space<vmem>>, vector<1x128xf32>
    %31 = vector.broadcast %30 : vector<1x128xf32> to vector<128x128xf32>
    %32 = arith.addf %29, %31 : vector<128x128xf32>
    %33 = arith.truncf %32 : vector<128x128xf32> to vector<128x128xbf16>
    %34 = math.tanh %33 : vector<128x128xbf16>
    %35 = arith.extf %34 : vector<128x128xbf16> to vector<128x128xf32>
    %c0_12 = arith.constant 0 : index
    %c0_13 = arith.constant 0 : index
    %36 = vector.load %arg9[%c0_12, %c0_13] : memref<1x128xf32, #tpu.memory_space<vmem>>, vector<1x128xf32>
    %37 = vector.broadcast %36 : vector<1x128xf32> to vector<128x128xf32>
    %38 = arith.mulf %35, %37 : vector<128x128xf32>
    %cst_14 = arith.constant dense<0.000000e+00> : vector<128xf32>
    %39 = vector.multi_reduction <add>, %38, %cst_14 [1] : vector<128x128xf32> to vector<128xf32>
    %40 = vector.shape_cast %39 : vector<128xf32> to vector<128x1xf32>
    %c0_15 = arith.constant 0 : index
    %c0_16 = arith.constant 0 : index
    %41 = vector.load %arg10[%c0_15, %c0_16] : memref<1x1xf32, #tpu.memory_space<vmem>>, vector<1x1xf32>
    %42 = vector.broadcast %41 : vector<1x1xf32> to vector<128x1xf32>
    %43 = arith.addf %40, %42 : vector<128x1xf32>
    %44 = vector.shape_cast %43 : vector<128x1xf32> to vector<8x16x1xf32>
    %45 = tpu.iota {dimensions = array<i32: 1>} : vector<8x16x1xi32>
    %c0_17 = arith.constant 0 : index
    %c0_18 = arith.constant 0 : index
    %46 = vector.load %arg2[%c0_17, %c0_18] : memref<8x1xi32, #tpu.memory_space<vmem>>, vector<8x1xi32>
    %47 = vector.shape_cast %46 : vector<8x1xi32> to vector<8x1x1xi32>
    %48 = vector.broadcast %47 : vector<8x1x1xi32> to vector<8x16x1xi32>
    %49 = arith.cmpi slt, %45, %48 : vector<8x16x1xi32>
    %50 = arith.extui %49 : vector<8x16x1xi1> to vector<8x16x1xi32>
    %51 = arith.sitofp %50 : vector<8x16x1xi32> to vector<8x16x1xf32>
    %cst_19 = arith.constant 0.000000e+00 : f32
    %52 = vector.broadcast %cst_19 : f32 to vector<8x16x1xf32>
    %53 = arith.cmpf ogt, %51, %52 : vector<8x16x1xf32>
    %cst_20 = arith.constant -1.000000e+30 : f32
    %54 = vector.broadcast %cst_20 : f32 to vector<8x16x1xf32>
    %55 = arith.select %53, %44, %54 : vector<8x16x1xi1>, vector<8x16x1xf32>
    %cst_21 = arith.constant dense<0xFF800000> : vector<8x1xf32>
    %56 = vector.multi_reduction <maximumf>, %55, %cst_21 [1] : vector<8x16x1xf32> to vector<8x1xf32>
    %57 = vector.shape_cast %56 : vector<8x1xf32> to vector<8x1x1xf32>
    %cst_22 = arith.constant 0.000000e+00 : f32
    %58 = vector.broadcast %cst_22 : f32 to vector<8x1x1xf32>
    %59 = arith.maximumf %57, %58 : vector<8x1x1xf32>
    %60 = vector.broadcast %59 : vector<8x1x1xf32> to vector<8x16x1xf32>
    %61 = arith.subf %44, %60 : vector<8x16x1xf32>
    %62 = math.exp %61 : vector<8x16x1xf32>
    %63 = arith.mulf %62, %51 : vector<8x16x1xf32>
    %cst_23 = arith.constant dense<0.000000e+00> : vector<8x1xf32>
    %64 = vector.multi_reduction <add>, %63, %cst_23 [1] : vector<8x16x1xf32> to vector<8x1xf32>
    %65 = vector.shape_cast %64 : vector<8x1xf32> to vector<8x1x1xf32>
    %cst_24 = arith.constant 9.99999993E-9 : f32
    %66 = vector.broadcast %cst_24 : f32 to vector<8x1x1xf32>
    %67 = arith.addf %65, %66 : vector<8x1x1xf32>
    %68 = vector.broadcast %67 : vector<8x1x1xf32> to vector<8x16x1xf32>
    %69 = arith.divf %63, %68 : vector<8x16x1xf32>
    %70 = vector.shape_cast %26 : vector<128x128xf32> to vector<8x16x128xf32>
    %71 = vector.broadcast %69 : vector<8x16x1xf32> to vector<8x16x128xf32>
    %72 = arith.mulf %70, %71 : vector<8x16x128xf32>
    %cst_25 = arith.constant dense<0.000000e+00> : vector<8x128xf32>
    %73 = vector.multi_reduction <add>, %72, %cst_25 [1] : vector<8x16x128xf32> to vector<8x128xf32>
    %74 = arith.truncf %73 : vector<8x128xf32> to vector<8x128xbf16>
    %c0_26 = arith.constant 0 : index
    %c0_27 = arith.constant 0 : index
    %75 = vector.load %arg11[%c0_26, %c0_27] : memref<128x128xbf16, #tpu.memory_space<vmem>>, vector<128x128xbf16>
    %cst_28 = arith.constant dense<0.000000e+00> : vector<8x128xf32>
    %76 = tpu.matmul %74, %75, %cst_28 {dimension_numbers = #tpu.dot_dimension_numbers<[1], [0], [0], [1], [0, 0, 1, 1], [], []>} : vector<8x128xbf16>, vector<128x128xbf16>, vector<8x128xf32> -> vector<8x128xf32>
    %c0_29 = arith.constant 0 : index
    %c0_30 = arith.constant 0 : index
    %77 = vector.load %arg3[%c0_29, %c0_30] : memref<8x128xbf16, #tpu.memory_space<vmem>>, vector<8x128xbf16>
    %c0_31 = arith.constant 0 : index
    %c0_32 = arith.constant 0 : index
    %78 = vector.load %arg12[%c0_31, %c0_32] : memref<128x128xbf16, #tpu.memory_space<vmem>>, vector<128x128xbf16>
    %cst_33 = arith.constant dense<0.000000e+00> : vector<8x128xf32>
    %79 = tpu.matmul %77, %78, %cst_33 {dimension_numbers = #tpu.dot_dimension_numbers<[1], [0], [0], [1], [0, 0, 1, 1], [], []>} : vector<8x128xbf16>, vector<128x128xbf16>, vector<8x128xf32> -> vector<8x128xf32>
    %80 = arith.addf %76, %79 : vector<8x128xf32>
    %c0_34 = arith.constant 0 : index
    %c0_35 = arith.constant 0 : index
    %81 = vector.load %arg4[%c0_34, %c0_35] : memref<8x128xbf16, #tpu.memory_space<vmem>>, vector<8x128xbf16>
    %c0_36 = arith.constant 0 : index
    %c0_37 = arith.constant 0 : index
    %82 = vector.load %arg13[%c0_36, %c0_37] : memref<128x128xbf16, #tpu.memory_space<vmem>>, vector<128x128xbf16>
    %cst_38 = arith.constant dense<0.000000e+00> : vector<8x128xf32>
    %83 = tpu.matmul %81, %82, %cst_38 {dimension_numbers = #tpu.dot_dimension_numbers<[1], [0], [0], [1], [0, 0, 1, 1], [], []>} : vector<8x128xbf16>, vector<128x128xbf16>, vector<8x128xf32> -> vector<8x128xf32>
    %84 = arith.addf %80, %83 : vector<8x128xf32>
    %c0_39 = arith.constant 0 : index
    %c0_40 = arith.constant 0 : index
    %85 = vector.load %arg14[%c0_39, %c0_40] : memref<1x128xf32, #tpu.memory_space<vmem>>, vector<1x128xf32>
    %86 = vector.broadcast %85 : vector<1x128xf32> to vector<8x128xf32>
    %87 = arith.addf %84, %86 : vector<8x128xf32>
    %c0_41 = arith.constant 0 : index
    %c0_42 = arith.constant 0 : index
    %88 = vector.load %arg15[%c0_41, %c0_42] : memref<8x128xf32, #tpu.memory_space<vmem>>, vector<8x128xf32>
    tpu.vector_store %arg15[%c0_41, %c0_42], %87 {strides = array<i32>} : memref<8x128xf32, #tpu.memory_space<vmem>>, vector<8x128xf32>,
    return
  }
  func.func @transform_0(%arg0: i32) -> (i32, i32) {
    %c0_i32 = arith.constant 0 : i32
    %c0_i32_0 = arith.constant 0 : i32
    return %arg0, %c0_i32 : i32, i32
  }
  func.func @transform_1(%arg0: i32) -> (i32, i32) {
    %c0_i32 = arith.constant 0 : i32
    %c0_i32_0 = arith.constant 0 : i32
    return %arg0, %c0_i32 : i32, i32
  }
  func.func @transform_2(%arg0: i32) -> (i32, i32) {
    %c0_i32 = arith.constant 0 : i32
    %c0_i32_0 = arith.constant 0 : i32
    return %arg0, %c0_i32 : i32, i32
  }
  func.func @transform_3(%arg0: i32) -> (i32, i32) {
    %c0_i32 = arith.constant 0 : i32
    %c0_i32_0 = arith.constant 0 : i32
    return %arg0, %c0_i32 : i32, i32
  }
  func.func @transform_4(%arg0: i32) -> (i32, i32) {
    %c0_i32 = arith.constant 0 : i32
    %c0_i32_0 = arith.constant 0 : i32
    %c0_i32_1 = arith.constant 0 : i32
    return %c0_i32, %c0_i32_0 : i32, i32
  }
  func.func @transform_5(%arg0: i32) -> (i32, i32) {
    %c0_i32 = arith.constant 0 : i32
    %c0_i32_0 = arith.constant 0 : i32
    %c0_i32_1 = arith.constant 0 : i32
    return %c0_i32, %c0_i32_0 : i32, i32
  }
  func.func @transform_6(%arg0: i32) -> (i32, i32) {
    %c0_i32 = arith.constant 0 : i32
    %c0_i32_0 = arith.constant 0 : i32
    %c0_i32_1 = arith.constant 0 : i32
    return %c0_i32, %c0_i32_0 : i32, i32
  }
  func.func @transform_7(%arg0: i32) -> (i32, i32) {
    %c0_i32 = arith.constant 0 : i32
    %c0_i32_0 = arith.constant 0 : i32
    %c0_i32_1 = arith.constant 0 : i32
    return %c0_i32, %c0_i32_0 : i32, i32
  }
  func.func @transform_8(%arg0: i32) -> (i32, i32) {
    %c0_i32 = arith.constant 0 : i32
    %c0_i32_0 = arith.constant 0 : i32
    %c0_i32_1 = arith.constant 0 : i32
    return %c0_i32, %c0_i32_0 : i32, i32
  }
  func.func @transform_9(%arg0: i32) -> (i32, i32) {
    %c0_i32 = arith.constant 0 : i32
    %c0_i32_0 = arith.constant 0 : i32
    %c0_i32_1 = arith.constant 0 : i32
    return %c0_i32, %c0_i32_0 : i32, i32
  }
  func.func @transform_10(%arg0: i32) -> (i32, i32) {
    %c0_i32 = arith.constant 0 : i32
    %c0_i32_0 = arith.constant 0 : i32
    %c0_i32_1 = arith.constant 0 : i32
    return %c0_i32, %c0_i32_0 : i32, i32
  }
  func.func @transform_11(%arg0: i32) -> (i32, i32) {
    %c0_i32 = arith.constant 0 : i32
    %c0_i32_0 = arith.constant 0 : i32
    %c0_i32_1 = arith.constant 0 : i32
    return %c0_i32, %c0_i32_0 : i32, i32
  }
  func.func @transform_12(%arg0: i32) -> (i32, i32) {
    %c0_i32 = arith.constant 0 : i32
    %c0_i32_0 = arith.constant 0 : i32
    %c0_i32_1 = arith.constant 0 : i32
    return %c0_i32, %c0_i32_0 : i32, i32
  }
  func.func @transform_13(%arg0: i32) -> (i32, i32) {
    %c0_i32 = arith.constant 0 : i32
    %c0_i32_0 = arith.constant 0 : i32
    %c0_i32_1 = arith.constant 0 : i32
    return %c0_i32, %c0_i32_0 : i32, i32
  }
  func.func @transform_14(%arg0: i32) -> (i32, i32) {
    %c0_i32 = arith.constant 0 : i32
    %c0_i32_0 = arith.constant 0 : i32
    return %arg0, %c0_i32 : i32, i32
  }
}

</mosaic_0001>

<llo_original>
// kernel: news_encoder_forward.1
$region0: #{news_encoder_forward.1}
  #allocation0 [shape = 'u32[]', space=smem, size = 0x4, offset = 0x4, fixed_abs, tag = 'smem constant byte address 0x4 - core index']
  #allocation1 [shape = 'u32[144,128]{1,0:T(1,128)}', space=vmem, size = 0x12000, scoped, tag = 'internal scratch']
  #allocation2 [shape = 'f32[1,1]{1,0:T(1,128)S(1)}', space=vmem, size = 0x200, scoped, tag = 'scoped memory for news_encoder_forward.1']
  %s0 = inlined_call_operand.vmem [shape: bf16[512,128], index: 0, kind: input, shape index: {}]
  %s1 = inlined_call_operand.vmem [shape: s32[32,1], index: 1, kind: input, shape index: {}]
  %s2 = inlined_call_operand.vmem [shape: bf16[32,128], index: 2, kind: input, shape index: {}]
  %s3 = inlined_call_operand.vmem [shape: bf16[32,128], index: 3, kind: input, shape index: {}]
  %s4 = inlined_call_operand.vmem [shape: bf16[128,384], index: 4, kind: input, shape index: {}]
  %s5 = inlined_call_operand.vmem [shape: f32[1,128], index: 5, kind: input, shape index: {}]
  %s6 = inlined_call_operand.vmem [shape: bf16[128,128], index: 6, kind: input, shape index: {}]
  %s7 = inlined_call_operand.vmem [shape: f32[1,128], index: 7, kind: input, shape index: {}]
  %s8 = inlined_call_operand.vmem [shape: f32[1,128], index: 8, kind: input, shape index: {}]
  %s9 = inlined_call_operand.<no memory space> [shape: f32[1,1], index: 9, kind: input, shape index: {}]
  %s10 = inlined_call_operand.vmem [shape: bf16[128,128], index: 10, kind: input, shape index: {}]
  %s11 = inlined_call_operand.vmem [shape: bf16[128,128], index: 11, kind: input, shape index: {}]
  %s12 = inlined_call_operand.vmem [shape: bf16[128,128], index: 12, kind: input, shape index: {}]
  %s13 = inlined_call_operand.vmem [shape: f32[1,128], index: 13, kind: input, shape index: {}]
  %s14 = inlined_call_operand.hbm [shape: f32[32,128], index: 14, kind: output, shape index: {}]
  %s15 = sld [smem:[#allocation0]]
  $region89: #{news_encoder_forward.1} parent=0
    _
  %s17 = ssub.s32 1, %s15
  %s18 = scalar_select 0, %s17, %s15
  %v19 = vstv %s9
  %20 = vst [vmem:[#allocation2] sm:$0x1] %v19
  $region1: #{news_encoder_forward.1} parent=0
    #allocation3 [shape = 'u8[8192]{0}', space=vmem, size = 0x2000, scoped, tag = 'output window, operand 0']
    #allocation4 [shape = 's32[2]{0}', space=sflag, size = 0x8, scoped, tag = 'scoped memory for news_encoder_forward.1']
    %21 = vsyncpa [#allocation4], 0
    %s22 = scalar_lea.sflag [#allocation4], 1
    %23 = vsyncpa %s22, 0
    loop: start=0, step=1, limit=6
    $region2: #{news_encoder_forward.1} parent=1 // loop_pre_header
      _
    $region3: #{news_encoder_forward.1} parent=1 // loop_header
      %s25 = sphi 0, %s29
      %p26 = scmp.ge.s32.totalorder %s25, 6
      %s35 = sphi 0, %s37
      %s38 = sphi 0, %s35
      %s39 = sphi 0, %s38
      %s55 = sphi 0, %s39
      %s61 = sphi 0, %s63
      %s64 = sphi 0, %s61
      %s65 = sphi 0, %s64
      %s81 = sphi 0, %s65
      %s87 = sphi 0, %s89
      %s90 = sphi 0, %s87
      %s91 = sphi 0, %s90
      %s107 = sphi 0, %s91
      %s113 = sphi 0, %s115
      %s116 = sphi 0, %s113
      %s117 = sphi 0, %s116
      %s133 = sphi 0, %s117
      %s137 = sphi 0, %s137
      %s139 = sphi 0, %s137
      %s140 = sphi 0, %s139
      %s154 = sphi 0, %s140
      %s158 = sphi 0, %s158
      %s160 = sphi 0, %s158
      %s161 = sphi 0, %s160
      %s175 = sphi 0, %s161
      %s179 = sphi 0, %s179
      %s181 = sphi 0, %s179
      %s182 = sphi 0, %s181
      %s196 = sphi 0, %s182
      %s200 = sphi 0, %s200
      %s202 = sphi 0, %s200
      %s203 = sphi 0, %s202
      %s217 = sphi 0, %s203
      %s221 = sphi 0, %s221
      %s223 = sphi 0, %s221
      %s224 = sphi 0, %s223
      %s238 = sphi 0, %s224
      %s242 = sphi 0, %s242
      %s244 = sphi 0, %s242
      %s245 = sphi 0, %s244
      %s259 = sphi 0, %s245
      %s263 = sphi 0, %s263
      %s265 = sphi 0, %s263
      %s266 = sphi 0, %s265
      %s280 = sphi 0, %s266
      %s284 = sphi 0, %s284
      %s286 = sphi 0, %s284
      %s287 = sphi 0, %s286
      %s301 = sphi 0, %s287
      %s305 = sphi 0, %s305
      %s307 = sphi 0, %s305
      %s308 = sphi 0, %s307
      %s322 = sphi 0, %s308
      %s326 = sphi 0, %s326
      %s328 = sphi 0, %s326
      %s329 = sphi 0, %s328
      %s343 = sphi 0, %s329
      %s349 = sphi 0, %s351
      %s352 = sphi 0, %s349
      %s353 = sphi 0, %s352
      %s369 = sphi 0, %s353
    $region4: #{news_encoder_forward.1} parent=1 // loop_header_branch
      %28 = sbr.rel (%p26) target = $region8
    $region5: #{news_encoder_forward.1} parent=1 // loop_body
      %s30 = ssub.s32 %s25, 1
      %s31 = ssub.s32 %s25, 2
      %s32 = sadd.s32 %s25, 1
      %s33 = ssub.s32 %s25, %s32
      %p34 = scmp.eq.s32.totalorder %s33, 0
      %s36 = sadd.s32 %s35, 1
      %s37 = scalar_select %p34, %s35, %s36
      %p40 = pneg %p34
      %p41 = scmp.eq.s32.totalorder %s25, 3
      %p42 = por %p40, %p41
      %p43 = scmp.ne.s32.totalorder %s35, %s38
      %p44 = scmp.eq.s32.totalorder %s25, 0
      %p45 = por %p43, %p44
      %p46 = scmp.ne.s32.totalorder %s35, %s38
      %p47 = scmp.eq.s32.totalorder %s30, 3
      %p48 = por %p46, %p47
      %p49 = scmp.ne.s32.totalorder %s38, %s39
      %p50 = scmp.eq.s32.totalorder %s30, 0
      %p51 = por %p49, %p50
      %p52 = scmp.ne.s32.totalorder %s38, %s39
      %p53 = scmp.eq.s32.totalorder %s31, 3
      %p54 = por %p52, %p53
      %p56 = scmp.ne.s32.totalorder %s39, %s55
      %p57 = scmp.eq.s32.totalorder %s31, 0
      %p58 = por %p56, %p57
      %s59 = ssub.s32 %s25, %s32
      %p60 = scmp.eq.s32.totalorder %s59, 0
      %s62 = sadd.s32 %s61, 1
      %s63 = scalar_select %p60, %s61, %s62
      %p66 = pneg %p60
      %p67 = scmp.eq.s32.totalorder %s25, 3
      %p68 = por %p66, %p67
      %p69 = scmp.ne.s32.totalorder %s61, %s64
      %p70 = scmp.eq.s32.totalorder %s25, 0
      %p71 = por %p69, %p70
      %p72 = scmp.ne.s32.totalorder %s61, %s64
      %p73 = scmp.eq.s32.totalorder %s30, 3
      %p74 = por %p72, %p73
      %p75 = scmp.ne.s32.totalorder %s64, %s65
      %p76 = scmp.eq.s32.totalorder %s30, 0
      %p77 = por %p75, %p76
      %p78 = scmp.ne.s32.totalorder %s64, %s65
      %p79 = scmp.eq.s32.totalorder %s31, 3
      %p80 = por %p78, %p79
      %p82 = scmp.ne.s32.totalorder %s65, %s81
      %p83 = scmp.eq.s32.totalorder %s31, 0
      %p84 = por %p82, %p83
      %s85 = ssub.s32 %s25, %s32
      %p86 = scmp.eq.s32.totalorder %s85, 0
      %s88 = sadd.s32 %s87, 1
      %s89 = scalar_select %p86, %s87, %s88
      %p92 = pneg %p86
      %p93 = scmp.eq.s32.totalorder %s25, 3
      %p94 = por %p92, %p93
      %p95 = scmp.ne.s32.totalorder %s87, %s90
      %p96 = scmp.eq.s32.totalorder %s25, 0
      %p97 = por %p95, %p96
      %p98 = scmp.ne.s32.totalorder %s87, %s90
      %p99 = scmp.eq.s32.totalorder %s30, 3
      %p100 = por %p98, %p99
      %p101 = scmp.ne.s32.totalorder %s90, %s91
      %p102 = scmp.eq.s32.totalorder %s30, 0
      %p103 = por %p101, %p102
      %p104 = scmp.ne.s32.totalorder %s90, %s91
      %p105 = scmp.eq.s32.totalorder %s31, 3
      %p106 = por %p104, %p105
      %p108 = scmp.ne.s32.totalorder %s91, %s107
      %p109 = scmp.eq.s32.totalorder %s31, 0
      %p110 = por %p108, %p109
      %s111 = ssub.s32 %s25, %s32
      %p112 = scmp.eq.s32.totalorder %s111, 0
      %s114 = sadd.s32 %s113, 1
      %s115 = scalar_select %p112, %s113, %s114
      %p118 = pneg %p112
      %p119 = scmp.eq.s32.totalorder %s25, 3
      %p120 = por %p118, %p119
      %p121 = scmp.ne.s32.totalorder %s113, %s116
      %p122 = scmp.eq.s32.totalorder %s25, 0
      %p123 = por %p121, %p122
      %p124 = scmp.ne.s32.totalorder %s113, %s116
      %p125 = scmp.eq.s32.totalorder %s30, 3
      %p126 = por %p124, %p125
      %p127 = scmp.ne.s32.totalorder %s116, %s117
      %p128 = scmp.eq.s32.totalorder %s30, 0
      %p129 = por %p127, %p128
      %p130 = scmp.ne.s32.totalorder %s116, %s117
      %p131 = scmp.eq.s32.totalorder %s31, 3
      %p132 = por %p130, %p131
      %p134 = scmp.ne.s32.totalorder %s117, %s133
      %p135 = scmp.eq.s32.totalorder %s31, 0
      %p136 = por %p134, %p135
      %s138 = sadd.s32 %s137, 1
      %p141 = scmp.eq.s32.totalorder %s25, 3
      %p142 = scmp.ne.s32.totalorder %s137, %s139
      %p143 = scmp.eq.s32.totalorder %s25, 0
      %p144 = por %p142, %p143
      %p145 = scmp.ne.s32.totalorder %s137, %s139
      %p146 = scmp.eq.s32.totalorder %s30, 3
      %p147 = por %p145, %p146
      %p148 = scmp.ne.s32.totalorder %s139, %s140
      %p149 = scmp.eq.s32.totalorder %s30, 0
      %p150 = por %p148, %p149
      %p151 = scmp.ne.s32.totalorder %s139, %s140
      %p152 = scmp.eq.s32.totalorder %s31, 3
      %p153 = por %p151, %p152
      %p155 = scmp.ne.s32.totalorder %s140, %s154
      %p156 = scmp.eq.s32.totalorder %s31, 0
      %p157 = por %p155, %p156
      %s159 = sadd.s32 %s158, 1
      %p162 = scmp.eq.s32.totalorder %s25, 3
      %p163 = scmp.ne.s32.totalorder %s158, %s160
      %p164 = scmp.eq.s32.totalorder %s25, 0
      %p165 = por %p163, %p164
      %p166 = scmp.ne.s32.totalorder %s158, %s160
      %p167 = scmp.eq.s32.totalorder %s30, 3
      %p168 = por %p166, %p167
      %p169 = scmp.ne.s32.totalorder %s160, %s161
      %p170 = scmp.eq.s32.totalorder %s30, 0
      %p171 = por %p169, %p170
      %p172 = scmp.ne.s32.totalorder %s160, %s161
      %p173 = scmp.eq.s32.totalorder %s31, 3
      %p174 = por %p172, %p173
      %p176 = scmp.ne.s32.totalorder %s161, %s175
      %p177 = scmp.eq.s32.totalorder %s31, 0
      %p178 = por %p176, %p177
      %s180 = sadd.s32 %s179, 1
      %p183 = scmp.eq.s32.totalorder %s25, 3
      %p184 = scmp.ne.s32.totalorder %s179, %s181
      %p185 = scmp.eq.s32.totalorder %s25, 0
      %p186 = por %p184, %p185
      %p187 = scmp.ne.s32.totalorder %s179, %s181
      %p188 = scmp.eq.s32.totalorder %s30, 3
      %p189 = por %p187, %p188
      %p190 = scmp.ne.s32.totalorder %s181, %s182
      %p191 = scmp.eq.s32.totalorder %s30, 0
      %p192 = por %p190, %p191
      %p193 = scmp.ne.s32.totalorder %s181, %s182
      %p194 = scmp.eq.s32.totalorder %s31, 3
      %p195 = por %p193, %p194
      %p197 = scmp.ne.s32.totalorder %s182, %s196
      %p198 = scmp.eq.s32.totalorder %s31, 0
      %p199 = por %p197, %p198
      %s201 = sadd.s32 %s200, 1
      %p204 = scmp.eq.s32.totalorder %s25, 3
      %p205 = scmp.ne.s32.totalorder %s200, %s202
      %p206 = scmp.eq.s32.totalorder %s25, 0
      %p207 = por %p205, %p206
      %p208 = scmp.ne.s32.totalorder %s200, %s202
      %p209 = scmp.eq.s32.totalorder %s30, 3
      %p210 = por %p208, %p209
      %p211 = scmp.ne.s32.totalorder %s202, %s203
      %p212 = scmp.eq.s32.totalorder %s30, 0
      %p213 = por %p211, %p212
      %p214 = scmp.ne.s32.totalorder %s202, %s203
      %p215 = scmp.eq.s32.totalorder %s31, 3
      %p216 = por %p214, %p215
      %p218 = scmp.ne.s32.totalorder %s203, %s217
      %p219 = scmp.eq.s32.totalorder %s31, 0
      %p220 = por %p218, %p219
      %s222 = sadd.s32 %s221, 1
      %p225 = scmp.eq.s32.totalorder %s25, 3
      %p226 = scmp.ne.s32.totalorder %s221, %s223
      %p227 = scmp.eq.s32.totalorder %s25, 0
      %p228 = por %p226, %p227
      %p229 = scmp.ne.s32.totalorder %s221, %s223
      %p230 = scmp.eq.s32.totalorder %s30, 3
      %p231 = por %p229, %p230
      %p232 = scmp.ne.s32.totalorder %s223, %s224
      %p233 = scmp.eq.s32.totalorder %s30, 0
      %p234 = por %p232, %p233
      %p235 = scmp.ne.s32.totalorder %s223, %s224
      %p236 = scmp.eq.s32.totalorder %s31, 3
      %p237 = por %p235, %p236
      %p239 = scmp.ne.s32.totalorder %s224, %s238
      %p240 = scmp.eq.s32.totalorder %s31, 0
      %p241 = por %p239, %p240
      %s243 = sadd.s32 %s242, 1
      %p246 = scmp.eq.s32.totalorder %s25, 3
      %p247 = scmp.ne.s32.totalorder %s242, %s244
      %p248 = scmp.eq.s32.totalorder %s25, 0
      %p249 = por %p247, %p248
      %p250 = scmp.ne.s32.totalorder %s242, %s244
      %p251 = scmp.eq.s32.totalorder %s30, 3
      %p252 = por %p250, %p251
      %p253 = scmp.ne.s32.totalorder %s244, %s245
      %p254 = scmp.eq.s32.totalorder %s30, 0
      %p255 = por %p253, %p254
      %p256 = scmp.ne.s32.totalorder %s244, %s245
      %p257 = scmp.eq.s32.totalorder %s31, 3
      %p258 = por %p256, %p257
      %p260 = scmp.ne.s32.totalorder %s245, %s259
      %p261 = scmp.eq.s32.totalorder %s31, 0
      %p262 = por %p260, %p261
      %s264 = sadd.s32 %s263, 1
      %p267 = scmp.eq.s32.totalorder %s25, 3
      %p268 = scmp.ne.s32.totalorder %s263, %s265
      %p269 = scmp.eq.s32.totalorder %s25, 0
      %p270 = por %p268, %p269
      %p271 = scmp.ne.s32.totalorder %s263, %s265
      %p272 = scmp.eq.s32.totalorder %s30, 3
      %p273 = por %p271, %p272
      %p274 = scmp.ne.s32.totalorder %s265, %s266
      %p275 = scmp.eq.s32.totalorder %s30, 0
      %p276 = por %p274, %p275
      %p277 = scmp.ne.s32.totalorder %s265, %s266
      %p278 = scmp.eq.s32.totalorder %s31, 3
      %p279 = por %p277, %p278
      %p281 = scmp.ne.s32.totalorder %s266, %s280
      %p282 = scmp.eq.s32.totalorder %s31, 0
      %p283 = por %p281, %p282
      %s285 = sadd.s32 %s284, 1
      %p288 = scmp.eq.s32.totalorder %s25, 3
      %p289 = scmp.ne.s32.totalorder %s284, %s286
      %p290 = scmp.eq.s32.totalorder %s25, 0
      %p291 = por %p289, %p290
      %p292 = scmp.ne.s32.totalorder %s284, %s286
      %p293 = scmp.eq.s32.totalorder %s30, 3
      %p294 = por %p292, %p293
      %p295 = scmp.ne.s32.totalorder %s286, %s287
      %p296 = scmp.eq.s32.totalorder %s30, 0
      %p297 = por %p295, %p296
      %p298 = scmp.ne.s32.totalorder %s286, %s287
      %p299 = scmp.eq.s32.totalorder %s31, 3
      %p300 = por %p298, %p299
      %p302 = scmp.ne.s32.totalorder %s287, %s301
      %p303 = scmp.eq.s32.totalorder %s31, 0
      %p304 = por %p302, %p303
      %s306 = sadd.s32 %s305, 1
      %p309 = scmp.eq.s32.totalorder %s25, 3
      %p310 = scmp.ne.s32.totalorder %s305, %s307
      %p311 = scmp.eq.s32.totalorder %s25, 0
      %p312 = por %p310, %p311
      %p313 = scmp.ne.s32.totalorder %s305, %s307
      %p314 = scmp.eq.s32.totalorder %s30, 3
      %p315 = por %p313, %p314
      %p316 = scmp.ne.s32.totalorder %s307, %s308
      %p317 = scmp.eq.s32.totalorder %s30, 0
      %p318 = por %p316, %p317
      %p319 = scmp.ne.s32.totalorder %s307, %s308
      %p320 = scmp.eq.s32.totalorder %s31, 3
      %p321 = por %p319, %p320
      %p323 = scmp.ne.s32.totalorder %s308, %s322
      %p324 = scmp.eq.s32.totalorder %s31, 0
      %p325 = por %p323, %p324
      %s327 = sadd.s32 %s326, 1
      %p330 = scmp.eq.s32.totalorder %s25, 3
      %p331 = scmp.ne.s32.totalorder %s326, %s328
      %p332 = scmp.eq.s32.totalorder %s25, 0
      %p333 = por %p331, %p332
      %p334 = scmp.ne.s32.totalorder %s326, %s328
      %p335 = scmp.eq.s32.totalorder %s30, 3
      %p336 = por %p334, %p335
      %p337 = scmp.ne.s32.totalorder %s328, %s329
      %p338 = scmp.eq.s32.totalorder %s30, 0
      %p339 = por %p337, %p338
      %p340 = scmp.ne.s32.totalorder %s328, %s329
      %p341 = scmp.eq.s32.totalorder %s31, 3
      %p342 = por %p340, %p341
      %p344 = scmp.ne.s32.totalorder %s329, %s343
      %p345 = scmp.eq.s32.totalorder %s31, 0
      %p346 = por %p344, %p345
      %s347 = ssub.s32 %s25, %s32
      %p348 = scmp.eq.s32.totalorder %s347, 0
      %s350 = sadd.s32 %s349, 1
      %s351 = scalar_select %p348, %s349, %s350
      %p354 = pneg %p348
      %p355 = scmp.eq.s32.totalorder %s25, 3
      %p356 = por %p354, %p355
      %p357 = scmp.ne.s32.totalorder %s349, %s352
      %p358 = scmp.eq.s32.totalorder %s25, 0
      %p359 = por %p357, %p358
      %p360 = scmp.ne.s32.totalorder %s349, %s352
      %p361 = scmp.eq.s32.totalorder %s30, 3
      %p362 = por %p360, %p361
      %p363 = scmp.ne.s32.totalorder %s352, %s353
      %p364 = scmp.eq.s32.totalorder %s30, 0
      %p365 = por %p363, %p364
      %p366 = scmp.ne.s32.totalorder %s352, %s353
      %p367 = scmp.eq.s32.totalorder %s31, 3
      %p368 = por %p366, %p367
      %p370 = scmp.ne.s32.totalorder %s353, %s369
      %p371 = scmp.eq.s32.totalorder %s31, 0
      %p372 = por %p370, %p371
      %p373 = scmp.le.s32.totalorder 1, %s25
      %p374 = scmp.lt.s32.totalorder %s25, 5
      %p375 = pnand %p373, %p374
      %p376 = pneg %p375
      // Predicated region
      $region9: #{news_encoder_forward.1} parent=5 // pred_check
        _
      $region10: #{news_encoder_forward.1} parent=5 // pred_check_branch
        %378 = sbr.rel (%p375) target = $region12
      $region11: #{news_encoder_forward.1} parent=5 // pred_region
        %s379 = ssub.s32 %s25, 1
        // Predicated region
        $region13: #{news_encoder_forward.1} parent=11 // pred_check
          %p380 = pneg %p150
        $region14: #{news_encoder_forward.1} parent=11 // pred_check_branch
          %382 = sbr.rel (%p380) target = $region16
        $region15: #{news_encoder_forward.1} parent=11 // pred_region
          _
        $region16: #{news_encoder_forward.1} parent=11 // pred_fallthru
          _
        // Predicated region
        $region17: #{news_encoder_forward.1} parent=11 // pred_check
          %p383 = pneg %p171
        $region18: #{news_encoder_forward.1} parent=11 // pred_check_branch
          %385 = sbr.rel (%p383) target = $region20
        $region19: #{news_encoder_forward.1} parent=11 // pred_region
          _
        $region20: #{news_encoder_forward.1} parent=11 // pred_fallthru
          _
        // Predicated region
        $region21: #{news_encoder_forward.1} parent=11 // pred_check
          %p386 = pneg %p192
        $region22: #{news_encoder_forward.1} parent=11 // pred_check_branch
          %388 = sbr.rel (%p386) target = $region24
        $region23: #{news_encoder_forward.1} parent=11 // pred_region
          _
        $region24: #{news_encoder_forward.1} parent=11 // pred_fallthru
          _
        // Predicated region
        $region25: #{news_encoder_forward.1} parent=11 // pred_check
          %p389 = pneg %p213
        $region26: #{news_encoder_forward.1} parent=11 // pred_check_branch
          %391 = sbr.rel (%p389) target = $region28
        $region27: #{news_encoder_forward.1} parent=11 // pred_region
          _
        $region28: #{news_encoder_forward.1} parent=11 // pred_fallthru
          _
        // Predicated region
        $region29: #{news_encoder_forward.1} parent=11 // pred_check
          %p392 = pneg %p234
        $region30: #{news_encoder_forward.1} parent=11 // pred_check_branch
          %394 = sbr.rel (%p392) target = $region32
        $region31: #{news_encoder_forward.1} parent=11 // pred_region
          _
        $region32: #{news_encoder_forward.1} parent=11 // pred_fallthru
          _
        // Predicated region
        $region33: #{news_encoder_forward.1} parent=11 // pred_check
          %p395 = pneg %p255
        $region34: #{news_encoder_forward.1} parent=11 // pred_check_branch
          %397 = sbr.rel (%p395) target = $region36
        $region35: #{news_encoder_forward.1} parent=11 // pred_region
          _
        $region36: #{news_encoder_forward.1} parent=11 // pred_fallthru
          _
        // Predicated region
        $region37: #{news_encoder_forward.1} parent=11 // pred_check
          %p398 = pneg %p276
        $region38: #{news_encoder_forward.1} parent=11 // pred_check_branch
          %400 = sbr.rel (%p398) target = $region40
        $region39: #{news_encoder_forward.1} parent=11 // pred_region
          _
        $region40: #{news_encoder_forward.1} parent=11 // pred_fallthru
          _
        // Predicated region
        $region41: #{news_encoder_forward.1} parent=11 // pred_check
          %p401 = pneg %p297
        $region42: #{news_encoder_forward.1} parent=11 // pred_check_branch
          %403 = sbr.rel (%p401) target = $region44
        $region43: #{news_encoder_forward.1} parent=11 // pred_region
          _
        $region44: #{news_encoder_forward.1} parent=11 // pred_fallthru
          _
        // Predicated region
        $region45: #{news_encoder_forward.1} parent=11 // pred_check
          %p404 = pneg %p318
        $region46: #{news_encoder_forward.1} parent=11 // pred_check_branch
          %406 = sbr.rel (%p404) target = $region48
        $region47: #{news_encoder_forward.1} parent=11 // pred_region
          _
        $region48: #{news_encoder_forward.1} parent=11 // pred_fallthru
          _
        // Predicated region
        $region49: #{news_encoder_forward.1} parent=11 // pred_check
          %p407 = pneg %p339
        $region50: #{news_encoder_forward.1} parent=11 // pred_check_branch
          %409 = sbr.rel (%p407) target = $region52
        $region51: #{news_encoder_forward.1} parent=11 // pred_region
          _
        $region52: #{news_encoder_forward.1} parent=11 // pred_fallthru
          _
      $region12: #{news_encoder_forward.1} parent=5 // pred_fallthru
        _
      %p410 = scmp.lt.s32.totalorder %s25, 4
      // Predicated region
      $region53: #{news_encoder_forward.1} parent=5 // pred_check
        %p411 = pneg %p410
      $region54: #{news_encoder_forward.1} parent=5 // pred_check_branch
        %413 = sbr.rel (%p411) target = $region56
      $region55: #{news_encoder_forward.1} parent=5 // pred_region
        // Predicated region
        $region57: #{news_encoder_forward.1} parent=55 // pred_check
          %p414 = pneg %p45
        $region58: #{news_encoder_forward.1} parent=55 // pred_check_branch
          %416 = sbr.rel (%p414) target = $region60
        $region59: #{news_encoder_forward.1} parent=55 // pred_region
          %s417 = smul.u32 16, %s25
          %p418 = scmp.lt.s32.totalorder %s417, 63
          %s419 = scalar_select %p418, %s417, 63
          %s420 = smul.addr %s419, 4
          %s421 = scalar_lea.vmem %s0, %s420
          %s422 = smul.u32 16, %s25
        $region60: #{news_encoder_forward.1} parent=55 // pred_fallthru
          _
        // Predicated region
        $region61: #{news_encoder_forward.1} parent=55 // pred_check
          %p423 = pneg %p71
        $region62: #{news_encoder_forward.1} parent=55 // pred_check_branch
          %425 = sbr.rel (%p423) target = $region64
        $region63: #{news_encoder_forward.1} parent=55 // pred_region
          %p426 = scmp.lt.s32.totalorder %s25, 3
          %s427 = scalar_select %p426, %s25, 3
          %s428 = smul.addr %s427, 8
          %s429 = scalar_lea.vmem %s1, %s428
        $region64: #{news_encoder_forward.1} parent=55 // pred_fallthru
          _
        // Predicated region
        $region65: #{news_encoder_forward.1} parent=55 // pred_check
          %p430 = pneg %p97
        $region66: #{news_encoder_forward.1} parent=55 // pred_check_branch
          %432 = sbr.rel (%p430) target = $region68
        $region67: #{news_encoder_forward.1} parent=55 // pred_region
          %p433 = scmp.lt.s32.totalorder %s25, 3
          %s434 = scalar_select %p433, %s25, 3
          %s435 = smul.addr %s434, 4
          %s436 = scalar_lea.vmem %s2, %s435
        $region68: #{news_encoder_forward.1} parent=55 // pred_fallthru
          _
        // Predicated region
        $region69: #{news_encoder_forward.1} parent=55 // pred_check
          %p437 = pneg %p123
        $region70: #{news_encoder_forward.1} parent=55 // pred_check_branch
          %439 = sbr.rel (%p437) target = $region72
        $region71: #{news_encoder_forward.1} parent=55 // pred_region
          %p440 = scmp.lt.s32.totalorder %s25, 3
          %s441 = scalar_select %p440, %s25, 3
          %s442 = smul.addr %s441, 4
          %s443 = scalar_lea.vmem %s3, %s442
        $region72: #{news_encoder_forward.1} parent=55 // pred_fallthru
          _
      $region56: #{news_encoder_forward.1} parent=5 // pred_fallthru
        _
      %p444 = scmp.le.s32.totalorder 1, %s25
      %p445 = scmp.lt.s32.totalorder %s25, 5
      %p446 = pnand %p444, %p445
      %p447 = pneg %p446
      // Predicated region
      $region73: #{news_encoder_forward.1} parent=5 // pred_check
        _
      $region74: #{news_encoder_forward.1} parent=5 // pred_check_branch
        %449 = sbr.rel (%p446) target = $region76
      $region75: #{news_encoder_forward.1} parent=5 // pred_region
        %s450 = ssub.s32 %s25, 1
        %s451 = smul.u32 16, %s30
        %p452 = scmp.lt.s32.totalorder %s451, 63
        %s453 = scalar_select %p452, %s451, 63
        %s454 = smul.addr %s453, 4
        %s455 = scalar_lea.vmem %s0, %s454
        %p456 = pneg %p51
        %p457 = pneg %p48
        %p458 = scmp.lt.s32.totalorder %s30, 3
        %s459 = scalar_select %p458, %s30, 3
        %s460 = smul.addr %s459, 8
        %s461 = scalar_lea.vmem %s1, %s460
        %p462 = pneg %p77
        %p463 = pneg %p74
        %p464 = scmp.lt.s32.totalorder %s30, 3
        %s465 = scalar_select %p464, %s30, 3
        %s466 = smul.addr %s465, 4
        %s467 = scalar_lea.vmem %s2, %s466
        %p468 = pneg %p103
        %p469 = pneg %p100
        %p470 = scmp.lt.s32.totalorder %s30, 3
        %s471 = scalar_select %p470, %s30, 3
        %s472 = smul.addr %s471, 4
        %s473 = scalar_lea.vmem %s3, %s472
        %p474 = pneg %p129
        %p475 = pneg %p126
        %p476 = pneg %p150
        %p477 = pneg %p147
        %p478 = pneg %p171
        %p479 = pneg %p168
        %p480 = pneg %p192
        %p481 = pneg %p189
        %p482 = pneg %p213
        %p483 = pneg %p210
        %p484 = pneg %p234
        %p485 = pneg %p231
        %p486 = pneg %p255
        %p487 = pneg %p252
        %p488 = pneg %p276
        %p489 = pneg %p273
        %p490 = pneg %p297
        %p491 = pneg %p294
        %p492 = pneg %p318
        %p493 = pneg %p315
        %p494 = pneg %p339
        %p495 = pneg %p336
        %p496 = pneg %p365
        %p497 = pneg %p362
        %s498 = sand.u32 %s352, 1
        %s499 = scalar_lea.sflag [#allocation4], %s498
        %s500 = sand.u32 %s352, 1
        %s501 = smul.addr %s500, 8
        %s502 = scalar_lea.vmem [#allocation3], %s501
        %s503 = smul.u32 16, %s30
        %p504 = scmp.lt.s32.totalorder %s503, 63
        %s505 = scalar_select %p504, %s503, 63
        %s506 = smul.addr %s505, 4
        %s507 = scalar_lea.vmem %s0, %s506
        %s508 = smul.u32 16, %s30
        %p509 = scmp.lt.s32.totalorder %s30, 3
        %s510 = scalar_select %p509, %s30, 3
        %s511 = smul.addr %s510, 8
        %s512 = scalar_lea.vmem %s1, %s511
        %p513 = scmp.lt.s32.totalorder %s30, 3
        %s514 = scalar_select %p513, %s30, 3
        %s515 = smul.addr %s514, 4
        %s516 = scalar_lea.vmem %s2, %s515
        %p517 = scmp.lt.s32.totalorder %s30, 3
        %s518 = scalar_select %p517, %s30, 3
        %s519 = smul.addr %s518, 4
        %s520 = scalar_lea.vmem %s3, %s519
        %v522 = vld [vmem:[%s507] sm:$0xf]
        %v523 = vld [vmem:[%s507 + $0x4] sm:$0xf]
        %v524 = vld [vmem:[%s507 + $0x8] sm:$0xf]
        %v525 = vld [vmem:[%s507 + $0xc] sm:$0xf]
        %v526 = vld [vmem:[%s507 + $0x10] sm:$0xf]
        %v527 = vld [vmem:[%s507 + $0x14] sm:$0xf]
        %v528 = vld [vmem:[%s507 + $0x18] sm:$0xf]
        %v529 = vld [vmem:[%s507 + $0x1c] sm:$0xf]
        %v530 = vld [vmem:[%s507 + $0x20] sm:$0xf]
        %v531 = vld [vmem:[%s507 + $0x24] sm:$0xf]
        %v532 = vld [vmem:[%s507 + $0x28] sm:$0xf]
        %v533 = vld [vmem:[%s507 + $0x2c] sm:$0xf]
        %v534 = vld [vmem:[%s507 + $0x30] sm:$0xf]
        %v535 = vld [vmem:[%s507 + $0x34] sm:$0xf]
        %v536 = vld [vmem:[%s507 + $0x38] sm:$0xf]
        %v537 = vld [vmem:[%s507 + $0x3c] sm:$0xf]
        %v538 = vlaneseq
        %v539 = vshrl.u32 %v538, 7
        %v540 = vadd.s32 %v539, 8
        %vm541 = vcmp.eq.s32.totalorder %v539, 0
        %vm542 = vcmp.eq.s32.totalorder %v540, 0
        %vm543 = vcmp.eq.s32.totalorder %v539, 15
        %vm544 = vcmp.eq.s32.totalorder %v540, 15
        %v545 = vld [vmem:[%s4] sm:$0xff]
        %v546 = vld [vmem:[%s4 + $0x8] sm:$0xf]
        %v547 = vld [vmem:[%s4 + $0xc] sm:$0xff]
        %v548 = vld [vmem:[%s4 + $0x14] sm:$0xf]
        %v549 = vld [vmem:[%s4 + $0x18] sm:$0xff]
        %v550 = vld [vmem:[%s4 + $0x20] sm:$0xf]
        %v551 = vld [vmem:[%s4 + $0x24] sm:$0xff]
        %v552 = vld [vmem:[%s4 + $0x2c] sm:$0xf]
        %v553 = vld [vmem:[%s4 + $0x30] sm:$0xff]
        %v554 = vld [vmem:[%s4 + $0x38] sm:$0xf]
        %v555 = vld [vmem:[%s4 + $0x3c] sm:$0xff]
        %v556 = vld [vmem:[%s4 + $0x44] sm:$0xf]
        %v557 = vld [vmem:[%s4 + $0x48] sm:$0xff]
        %v558 = vld [vmem:[%s4 + $0x50] sm:$0xf]
        %v559 = vld [vmem:[%s4 + $0x54] sm:$0xff]
        %v560 = vld [vmem:[%s4 + $0x5c] sm:$0xf]
        %v561 = vld [vmem:[%s4 + $0x60] sm:$0xff]
        %v562 = vld [vmem:[%s4 + $0x68] sm:$0xf]
        %v563 = vld [vmem:[%s4 + $0x6c] sm:$0xff]
        %v564 = vld [vmem:[%s4 + $0x74] sm:$0xf]
        %v565 = vld [vmem:[%s4 + $0x78] sm:$0xff]
        %v566 = vld [vmem:[%s4 + $0x80] sm:$0xf]
        %v567 = vld [vmem:[%s4 + $0x84] sm:$0xff]
        %v568 = vld [vmem:[%s4 + $0x8c] sm:$0xf]
        %v569 = vld [vmem:[%s4 + $0x90] sm:$0xff]
        %v570 = vld [vmem:[%s4 + $0x98] sm:$0xf]
        %v571 = vld [vmem:[%s4 + $0x9c] sm:$0xff]
        %v572 = vld [vmem:[%s4 + $0xa4] sm:$0xf]
        %v573 = vld [vmem:[%s4 + $0xa8] sm:$0xff]
        %v574 = vld [vmem:[%s4 + $0xb0] sm:$0xf]
        %v575 = vld [vmem:[%s4 + $0xb4] sm:$0xff]
        %v576 = vld [vmem:[%s4 + $0xbc] sm:$0xf]
        %v593 = vunpack.c.l.b16 %v522
        %v594 = vunpack.c.l.b16 %v523
        %v595 = vunpack.c.l.b16 %v524
        %v596 = vunpack.c.l.b16 %v525
        %v597 = vunpack.c.l.b16 %v526
        %v598 = vunpack.c.l.b16 %v527
        %v599 = vunpack.c.l.b16 %v528
        %v600 = vunpack.c.l.b16 %v529
        %v601 = vunpack.c.l.b16 %v530
        %v602 = vunpack.c.l.b16 %v531
        %v603 = vunpack.c.l.b16 %v532
        %v604 = vunpack.c.l.b16 %v533
        %v605 = vunpack.c.l.b16 %v534
        %v606 = vunpack.c.l.b16 %v535
        %v607 = vunpack.c.l.b16 %v536
        %v608 = vunpack.c.l.b16 %v537
        %v609 = vpack.c.b16 %v594, %v593
        %v610 = vpack.c.b16 %v596, %v595
        %v611 = vpack.c.b16 %v598, %v597
        %v612 = vpack.c.b16 %v600, %v599
        %v613 = vpack.c.b16 %v602, %v601
        %v614 = vpack.c.b16 %v604, %v603
        %v615 = vpack.c.b16 %v606, %v605
        %v616 = vpack.c.b16 %v608, %v607
        %v657 = vunpack.c.l.b16 %v545
        %v658 = vunpack.c.h.b16 %v545
        %v659 = vunpack.c.l.b16 %v546
        %v660 = vunpack.c.l.b16 %v547
        %v661 = vunpack.c.h.b16 %v547
        %v662 = vunpack.c.l.b16 %v548
        %v663 = vunpack.c.l.b16 %v549
        %v664 = vunpack.c.h.b16 %v549
        %v665 = vunpack.c.l.b16 %v550
        %v666 = vunpack.c.l.b16 %v551
        %v667 = vunpack.c.h.b16 %v551
        %v668 = vunpack.c.l.b16 %v552
        %v669 = vunpack.c.l.b16 %v553
        %v670 = vunpack.c.h.b16 %v553
        %v671 = vunpack.c.l.b16 %v554
        %v672 = vunpack.c.l.b16 %v555
        %v673 = vunpack.c.h.b16 %v555
        %v674 = vunpack.c.l.b16 %v556
        %v675 = vunpack.c.l.b16 %v557
        %v676 = vunpack.c.h.b16 %v557
        %v677 = vunpack.c.l.b16 %v558
        %v678 = vunpack.c.l.b16 %v559
        %v679 = vunpack.c.h.b16 %v559
        %v680 = vunpack.c.l.b16 %v560
        %v681 = vunpack.c.l.b16 %v561
        %v682 = vunpack.c.h.b16 %v561
        %v683 = vunpack.c.l.b16 %v562
        %v684 = vunpack.c.l.b16 %v563
        %v685 = vunpack.c.h.b16 %v563
        %v686 = vunpack.c.l.b16 %v564
        %v687 = vunpack.c.l.b16 %v565
        %v688 = vunpack.c.h.b16 %v565
        %v689 = vunpack.c.l.b16 %v566
        %v690 = vunpack.c.l.b16 %v567
        %v691 = vunpack.c.h.b16 %v567
        %v692 = vunpack.c.l.b16 %v568
        %v693 = vunpack.c.l.b16 %v569
        %v694 = vunpack.c.h.b16 %v569
        %v695 = vunpack.c.l.b16 %v570
        %v696 = vunpack.c.l.b16 %v571
        %v697 = vunpack.c.h.b16 %v571
        %v698 = vunpack.c.l.b16 %v572
        %v699 = vunpack.c.l.b16 %v573
        %v700 = vunpack.c.h.b16 %v573
        %v701 = vunpack.c.l.b16 %v574
        %v702 = vunpack.c.l.b16 %v575
        %v703 = vunpack.c.h.b16 %v575
        %v704 = vunpack.c.l.b16 %v576
        %v705 = vpack.c.b16 %v660, %v657
        %v706 = vpack.c.b16 %v661, %v658
        %v707 = vpack.c.b16 %v662, %v659
        %v708 = vpack.c.b16 %v666, %v663
        %v709 = vpack.c.b16 %v667, %v664
        %v710 = vpack.c.b16 %v668, %v665
        %v711 = vpack.c.b16 %v672, %v669
        %v712 = vpack.c.b16 %v673, %v670
        %v713 = vpack.c.b16 %v674, %v671
        %v714 = vpack.c.b16 %v678, %v675
        %v715 = vpack.c.b16 %v679, %v676
        %v716 = vpack.c.b16 %v680, %v677
        %v717 = vpack.c.b16 %v684, %v681
        %v718 = vpack.c.b16 %v685, %v682
        %v719 = vpack.c.b16 %v686, %v683
        %v720 = vpack.c.b16 %v690, %v687
        %v721 = vpack.c.b16 %v691, %v688
        %v722 = vpack.c.b16 %v692, %v689
        %v723 = vpack.c.b16 %v696, %v693
        %v724 = vpack.c.b16 %v697, %v694
        %v725 = vpack.c.b16 %v698, %v695
        %v726 = vpack.c.b16 %v702, %v699
        %v727 = vpack.c.b16 %v703, %v700
        %v728 = vpack.c.b16 %v704, %v701
        %753 = vmatprep.subr.bf16.mxu0 %v727
        %754 = vmatpush1.bf16.msra.mxu0 %v726
        %755 = vmatprep.subr.bf16.mxu0 %v724
        %756 = vmatpush1.bf16.msra.mxu0 %v723
        %757 = vmatprep.subr.bf16.mxu0 %v721
        %758 = vmatpush1.bf16.msra.mxu0 %v720
        %759 = vmatprep.subr.bf16.mxu0 %v718
        %760 = vmatpush1.bf16.msra.mxu0 %v717
        %761 = vmatprep.subr.bf16.mxu0 %v715
        %762 = vmatpush1.bf16.msra.mxu0 %v714
        %763 = vmatprep.subr.bf16.mxu0 %v712
        %764 = vmatpush1.bf16.msra.mxu0 %v711
        %765 = vmatprep.subr.bf16.mxu0 %v709
        %766 = vmatpush1.bf16.msra.mxu0 %v708
        %767 = vmatprep.subr.bf16.mxu0 %v706
        %768 = vmatpush1.bf16.msra.mxu0 %v705
        %769 = vmatprep.subr.bf16.mxu0 0
        %770 = vmatpush2.bf16.msra.mxu0 0
        %771 = vmatprep.subr.bf16.mxu0 0
        %772 = vmatpush2.bf16.msra.mxu0 0
        %773 = vmatprep.subr.bf16.mxu0 0
        %774 = vmatpush2.bf16.msra.mxu0 0
        %775 = vmatprep.subr.bf16.mxu0 0
        %776 = vmatpush2.bf16.msra.mxu0 0
        %777 = vmatprep.subr.bf16.mxu0 0
        %778 = vmatpush2.bf16.msra.mxu0 0
        %779 = vmatprep.subr.bf16.mxu0 0
        %780 = vmatpush2.bf16.msra.mxu0 0
        %781 = vmatprep.subr.bf16.mxu0 0
        %782 = vmatpush2.bf16.msra.mxu0 0
        %783 = vmatprep.subr.bf16.mxu0 0
        %784 = vmatpush2.bf16.msra.mxu0 0
        %785 = vmatprep.mubr.bf16.mxu0 0
        %786 = vmatmul.mubr.bf16.gmra.mxu0 %v609
        %v787 = vpop.f32.mrf.mxu0
        %v788 = vadd.f32 0.0, %v787
        %v789 = vpop.f32.mrf.mxu0
        %v790 = vadd.f32 0.0, %v789
        %v791 = vpop.f32.mrf.mxu0
        %v792 = vadd.f32 0.0, %v791
        %v793 = vpop.f32.mrf.mxu0
        %v794 = vadd.f32 0.0, %v793
        %795 = vmatprep.mubr.bf16.mxu0 0
        %796 = vmatmul.mubr.bf16.gmra.mxu0 %v610
        %v797 = vpop.f32.mrf.mxu0
        %v798 = vadd.f32 0.0, %v797
        %v799 = vpop.f32.mrf.mxu0
        %v800 = vadd.f32 0.0, %v799
        %v801 = vpop.f32.mrf.mxu0
        %v802 = vadd.f32 0.0, %v801
        %v803 = vpop.f32.mrf.mxu0
        %v804 = vadd.f32 0.0, %v803
        %805 = vmatprep.mubr.bf16.mxu0 0
        %806 = vmatmul.mubr.bf16.gmra.mxu0 %v611
        %v807 = vpop.f32.mrf.mxu0
        %v808 = vadd.f32 0.0, %v807
        %v809 = vpop.f32.mrf.mxu0
        %v810 = vadd.f32 0.0, %v809
        %v811 = vpop.f32.mrf.mxu0
        %v812 = vadd.f32 0.0, %v811
        %v813 = vpop.f32.mrf.mxu0
        %v814 = vadd.f32 0.0, %v813
        %815 = vmatprep.mubr.bf16.mxu0 0
        %816 = vmatmul.mubr.bf16.gmra.mxu0 %v612
        %v817 = vpop.f32.mrf.mxu0
        %v818 = vadd.f32 0.0, %v817
        %v819 = vpop.f32.mrf.mxu0
        %v820 = vadd.f32 0.0, %v819
        %v821 = vpop.f32.mrf.mxu0
        %v822 = vadd.f32 0.0, %v821
        %v823 = vpop.f32.mrf.mxu0
        %v824 = vadd.f32 0.0, %v823
        %825 = vmatprep.mubr.bf16.mxu0 0
        %826 = vmatmul.mubr.bf16.gmra.mxu0 %v613
        %v827 = vpop.f32.mrf.mxu0
        %v828 = vadd.f32 0.0, %v827
        %v829 = vpop.f32.mrf.mxu0
        %v830 = vadd.f32 0.0, %v829
        %v831 = vpop.f32.mrf.mxu0
        %v832 = vadd.f32 0.0, %v831
        %v833 = vpop.f32.mrf.mxu0
        %v834 = vadd.f32 0.0, %v833
        %835 = vmatprep.mubr.bf16.mxu0 0
        %836 = vmatmul.mubr.bf16.gmra.mxu0 %v614
        %v837 = vpop.f32.mrf.mxu0
        %v838 = vadd.f32 0.0, %v837
        %v839 = vpop.f32.mrf.mxu0
        %v840 = vadd.f32 0.0, %v839
        %v841 = vpop.f32.mrf.mxu0
        %v842 = vadd.f32 0.0, %v841
        %v843 = vpop.f32.mrf.mxu0
        %v844 = vadd.f32 0.0, %v843
        %845 = vmatprep.mubr.bf16.mxu0 0
        %846 = vmatmul.mubr.bf16.gmra.mxu0 %v615
        %v847 = vpop.f32.mrf.mxu0
        %v848 = vadd.f32 0.0, %v847
        %v849 = vpop.f32.mrf.mxu0
        %v850 = vadd.f32 0.0, %v849
        %v851 = vpop.f32.mrf.mxu0
        %v852 = vadd.f32 0.0, %v851
        %v853 = vpop.f32.mrf.mxu0
        %v854 = vadd.f32 0.0, %v853
        %855 = vmatprep.mubr.bf16.mxu0 0
        %856 = vmatmul.mubr.bf16.gmra.mxu0 %v616
        %v857 = vpop.f32.mrf.mxu0
        %v858 = vadd.f32 0.0, %v857
        %v859 = vpop.f32.mrf.mxu0
        %v860 = vadd.f32 0.0, %v859
        %v861 = vpop.f32.mrf.mxu0
        %v862 = vadd.f32 0.0, %v861
        %v863 = vpop.f32.mrf.mxu0
        %v864 = vadd.f32 0.0, %v863
        %865 = vdwg.mxu0
        %866 = vmatprep.subr.bf16.mxu0 0
        %867 = vmatpush1.bf16.msra.mxu0 %v728
        %868 = vmatprep.subr.bf16.mxu0 0
        %869 = vmatpush1.bf16.msra.mxu0 %v725
        %870 = vmatprep.subr.bf16.mxu0 0
        %871 = vmatpush1.bf16.msra.mxu0 %v722
        %872 = vmatprep.subr.bf16.mxu0 0
        %873 = vmatpush1.bf16.msra.mxu0 %v719
        %874 = vmatprep.subr.bf16.mxu0 0
        %875 = vmatpush1.bf16.msra.mxu0 %v716
        %876 = vmatprep.subr.bf16.mxu0 0
        %877 = vmatpush1.bf16.msra.mxu0 %v713
        %878 = vmatprep.subr.bf16.mxu0 0
        %879 = vmatpush1.bf16.msra.mxu0 %v710
        %880 = vmatprep.subr.bf16.mxu0 0
        %881 = vmatpush1.bf16.msra.mxu0 %v707
        %882 = vmatprep.subr.bf16.mxu0 0
        %883 = vmatpush2.bf16.msra.mxu0 0
        %884 = vmatprep.subr.bf16.mxu0 0
        %885 = vmatpush2.bf16.msra.mxu0 0
        %886 = vmatprep.subr.bf16.mxu0 0
        %887 = vmatpush2.bf16.msra.mxu0 0
        %888 = vmatprep.subr.bf16.mxu0 0
        %889 = vmatpush2.bf16.msra.mxu0 0
        %890 = vmatprep.subr.bf16.mxu0 0
        %891 = vmatpush2.bf16.msra.mxu0 0
        %892 = vmatprep.subr.bf16.mxu0 0
        %893 = vmatpush2.bf16.msra.mxu0 0
        %894 = vmatprep.subr.bf16.mxu0 0
        %895 = vmatpush2.bf16.msra.mxu0 0
        %896 = vmatprep.subr.bf16.mxu0 0
        %897 = vmatpush2.bf16.msra.mxu0 0
        %898 = vmatprep.mubr.bf16.mxu0 0
        %899 = vmatmul.mubr.bf16.gmra.mxu0 %v609
        %v900 = vpop.f32.mrf.mxu0
        %v901 = vadd.f32 0.0, %v900
        %v902 = vpop.f32.mrf.mxu0
        %v903 = vpop.f32.mrf.mxu0
        %v904 = vadd.f32 0.0, %v903
        %v905 = vpop.f32.mrf.mxu0
        %906 = vmatprep.mubr.bf16.mxu0 0
        %907 = vmatmul.mubr.bf16.gmra.mxu0 %v610
        %v908 = vpop.f32.mrf.mxu0
        %v909 = vadd.f32 0.0, %v908
        %v910 = vpop.f32.mrf.mxu0
        %v911 = vpop.f32.mrf.mxu0
        %v912 = vadd.f32 0.0, %v911
        %v913 = vpop.f32.mrf.mxu0
        %914 = vmatprep.mubr.bf16.mxu0 0
        %915 = vmatmul.mubr.bf16.gmra.mxu0 %v611
        %v916 = vpop.f32.mrf.mxu0
        %v917 = vadd.f32 0.0, %v916
        %v918 = vpop.f32.mrf.mxu0
        %v919 = vpop.f32.mrf.mxu0
        %v920 = vadd.f32 0.0, %v919
        %v921 = vpop.f32.mrf.mxu0
        %922 = vmatprep.mubr.bf16.mxu0 0
        %923 = vmatmul.mubr.bf16.gmra.mxu0 %v612
        %v924 = vpop.f32.mrf.mxu0
        %v925 = vadd.f32 0.0, %v924
        %v926 = vpop.f32.mrf.mxu0
        %v927 = vpop.f32.mrf.mxu0
        %v928 = vadd.f32 0.0, %v927
        %v929 = vpop.f32.mrf.mxu0
        %930 = vmatprep.mubr.bf16.mxu0 0
        %931 = vmatmul.mubr.bf16.gmra.mxu0 %v613
        %v932 = vpop.f32.mrf.mxu0
        %v933 = vadd.f32 0.0, %v932
        %v934 = vpop.f32.mrf.mxu0
        %v935 = vpop.f32.mrf.mxu0
        %v936 = vadd.f32 0.0, %v935
        %v937 = vpop.f32.mrf.mxu0
        %938 = vmatprep.mubr.bf16.mxu0 0
        %939 = vmatmul.mubr.bf16.gmra.mxu0 %v614
        %v940 = vpop.f32.mrf.mxu0
        %v941 = vadd.f32 0.0, %v940
        %v942 = vpop.f32.mrf.mxu0
        %v943 = vpop.f32.mrf.mxu0
        %v944 = vadd.f32 0.0, %v943
        %v945 = vpop.f32.mrf.mxu0
        %946 = vmatprep.mubr.bf16.mxu0 0
        %947 = vmatmul.mubr.bf16.gmra.mxu0 %v615
        %v948 = vpop.f32.mrf.mxu0
        %v949 = vadd.f32 0.0, %v948
        %v950 = vpop.f32.mrf.mxu0
        %v951 = vpop.f32.mrf.mxu0
        %v952 = vadd.f32 0.0, %v951
        %v953 = vpop.f32.mrf.mxu0
        %954 = vmatprep.mubr.bf16.mxu0 0
        %955 = vmatmul.mubr.bf16.gmra.mxu0 %v616
        %v956 = vpop.f32.mrf.mxu0
        %v957 = vadd.f32 0.0, %v956
        %v958 = vpop.f32.mrf.mxu0
        %v959 = vpop.f32.mrf.mxu0
        %v960 = vadd.f32 0.0, %v959
        %v961 = vpop.f32.mrf.mxu0
        %962 = vdwg.mxu0
        %v963 = vld [vmem:[%s5] sm:$0x1]
        %v965 = vlaneseq
        %v966 = vshrl.u32 %v965, 7
        %v967 = vsub.s32 0, %v966
        %v968 = vrot.slane %v963, %v967
        %v970 = vadd.f32 %v790, %v968
        %v971 = vadd.f32 %v794, %v968
        %v972 = vadd.f32 %v800, %v968
        %v973 = vadd.f32 %v804, %v968
        %v974 = vadd.f32 %v810, %v968
        %v975 = vadd.f32 %v814, %v968
        %v976 = vadd.f32 %v820, %v968
        %v977 = vadd.f32 %v824, %v968
        %v978 = vadd.f32 %v830, %v968
        %v979 = vadd.f32 %v834, %v968
        %v980 = vadd.f32 %v840, %v968
        %v981 = vadd.f32 %v844, %v968
        %v982 = vadd.f32 %v850, %v968
        %v983 = vadd.f32 %v854, %v968
        %v984 = vadd.f32 %v860, %v968
        %v985 = vadd.f32 %v864, %v968
        %v986 = vrot.slane %v788, 7
        %v987 = vrot.slane %v792, 7
        %v988 = vrot.slane %v798, 7
        %v989 = vrot.slane %v802, 7
        %v990 = vrot.slane %v808, 7
        %v991 = vrot.slane %v812, 7
        %v992 = vrot.slane %v818, 7
        %v993 = vrot.slane %v822, 7
        %v994 = vrot.slane %v828, 7
        %v995 = vrot.slane %v832, 7
        %v996 = vrot.slane %v838, 7
        %v997 = vrot.slane %v842, 7
        %v998 = vrot.slane %v848, 7
        %v999 = vrot.slane %v852, 7
        %v1000 = vrot.slane %v858, 7
        %v1001 = vrot.slane %v862, 7
        %vm1002 = vcmp.lt.s32.totalorder %v539, 1
        %v1003 = vsel %vm1002, %v1000, %v1001
        %v1004 = vsel %vm1002, %v999, %v1000
        %v1005 = vsel %vm1002, %v998, %v999
        %v1006 = vsel %vm1002, %v997, %v998
        %v1007 = vsel %vm1002, %v996, %v997
        %v1008 = vsel %vm1002, %v995, %v996
        %v1009 = vsel %vm1002, %v994, %v995
        %v1010 = vsel %vm1002, %v993, %v994
        %v1011 = vsel %vm1002, %v992, %v993
        %v1012 = vsel %vm1002, %v991, %v992
        %v1013 = vsel %vm1002, %v990, %v991
        %v1014 = vsel %vm1002, %v989, %v990
        %v1015 = vsel %vm1002, %v988, %v989
        %v1016 = vsel %vm1002, %v987, %v988
        %v1017 = vsel %vm1002, %v986, %v987
        %v1018 = vsel %vm1002, %v1001, %v986
        %v1019 = vsel %vm541, 1, 0
        %v1020 = vsel %vm542, 1, 0
        %vm1021 = vcmp.eq.s32.totalorder %v1019, 1
        %vm1022 = vcmp.eq.s32.totalorder %v1020, 1
        %v1023 = vsel %vm1021, 0.0, %v1018
        %v1024 = vsel %vm1022, 0.0, %v1017
        %v1025 = vsel %vm1021, 0.0, %v1016
        %v1026 = vsel %vm1022, 0.0, %v1015
        %v1027 = vsel %vm1021, 0.0, %v1014
        %v1028 = vsel %vm1022, 0.0, %v1013
        %v1029 = vsel %vm1021, 0.0, %v1012
        %v1030 = vsel %vm1022, 0.0, %v1011
        %v1031 = vsel %vm1021, 0.0, %v1010
        %v1032 = vsel %vm1022, 0.0, %v1009
        %v1033 = vsel %vm1021, 0.0, %v1008
        %v1034 = vsel %vm1022, 0.0, %v1007
        %v1035 = vsel %vm1021, 0.0, %v1006
        %v1036 = vsel %vm1022, 0.0, %v1005
        %v1037 = vsel %vm1021, 0.0, %v1004
        %v1038 = vsel %vm1022, 0.0, %v1003
        %v1039 = vadd.f32 %v970, %v1023
        %v1040 = vadd.f32 %v971, %v1024
        %v1041 = vadd.f32 %v972, %v1025
        %v1042 = vadd.f32 %v973, %v1026
        %v1043 = vadd.f32 %v974, %v1027
        %v1044 = vadd.f32 %v975, %v1028
        %v1045 = vadd.f32 %v976, %v1029
        %v1046 = vadd.f32 %v977, %v1030
        %v1047 = vadd.f32 %v978, %v1031
        %v1048 = vadd.f32 %v979, %v1032
        %v1049 = vadd.f32 %v980, %v1033
        %v1050 = vadd.f32 %v981, %v1034
        %v1051 = vadd.f32 %v982, %v1035
        %v1052 = vadd.f32 %v983, %v1036
        %v1053 = vadd.f32 %v984, %v1037
        %v1054 = vadd.f32 %v985, %v1038
        %v1055 = vrot.slane %v901, 1
        %v1056 = vrot.slane %v904, 1
        %v1057 = vrot.slane %v909, 1
        %v1058 = vrot.slane %v912, 1
        %v1059 = vrot.slane %v917, 1
        %v1060 = vrot.slane %v920, 1
        %v1061 = vrot.slane %v925, 1
        %v1062 = vrot.slane %v928, 1
        %v1063 = vrot.slane %v933, 1
        %v1064 = vrot.slane %v936, 1
        %v1065 = vrot.slane %v941, 1
        %v1066 = vrot.slane %v944, 1
        %v1067 = vrot.slane %v949, 1
        %v1068 = vrot.slane %v952, 1
        %v1069 = vrot.slane %v957, 1
        %v1070 = vrot.slane %v960, 1
        %vm1071 = vcmp.lt.s32.totalorder %v539, 7
        %v1072 = vsel %vm1071, %v1069, %v1070
        %v1073 = vsel %vm1071, %v1068, %v1069
        %v1074 = vsel %vm1071, %v1067, %v1068
        %v1075 = vsel %vm1071, %v1066, %v1067
        %v1076 = vsel %vm1071, %v1065, %v1066
        %v1077 = vsel %vm1071, %v1064, %v1065
        %v1078 = vsel %vm1071, %v1063, %v1064
        %v1079 = vsel %vm1071, %v1062, %v1063
        %v1080 = vsel %vm1071, %v1061, %v1062
        %v1081 = vsel %vm1071, %v1060, %v1061
        %v1082 = vsel %vm1071, %v1059, %v1060
        %v1083 = vsel %vm1071, %v1058, %v1059
        %v1084 = vsel %vm1071, %v1057, %v1058
        %v1085 = vsel %vm1071, %v1056, %v1057
        %v1086 = vsel %vm1071, %v1055, %v1056
        %v1087 = vsel %vm1071, %v1070, %v1055
        %v1088 = vsel %vm543, 1, 0
        %v1089 = vsel %vm544, 1, 0
        %vm1090 = vcmp.eq.s32.totalorder %v1088, 1
        %vm1091 = vcmp.eq.s32.totalorder %v1089, 1
        %v1092 = vsel %vm1090, 0.0, %v1086
        %v1093 = vsel %vm1091, 0.0, %v1085
        %v1094 = vsel %vm1090, 0.0, %v1084
        %v1095 = vsel %vm1091, 0.0, %v1083
        %v1096 = vsel %vm1090, 0.0, %v1082
        %v1097 = vsel %vm1091, 0.0, %v1081
        %v1098 = vsel %vm1090, 0.0, %v1080
        %v1099 = vsel %vm1091, 0.0, %v1079
        %v1100 = vsel %vm1090, 0.0, %v1078
        %v1101 = vsel %vm1091, 0.0, %v1077
        %v1102 = vsel %vm1090, 0.0, %v1076
        %v1103 = vsel %vm1091, 0.0, %v1075
        %v1104 = vsel %vm1090, 0.0, %v1074
        %v1105 = vsel %vm1091, 0.0, %v1073
        %v1106 = vsel %vm1090, 0.0, %v1072
        %v1107 = vsel %vm1091, 0.0, %v1087
        %v1108 = vadd.f32 %v1039, %v1092
        %v1109 = vadd.f32 %v1040, %v1093
        %v1110 = vadd.f32 %v1041, %v1094
        %v1111 = vadd.f32 %v1042, %v1095
        %v1112 = vadd.f32 %v1043, %v1096
        %v1113 = vadd.f32 %v1044, %v1097
        %v1114 = vadd.f32 %v1045, %v1098
        %v1115 = vadd.f32 %v1046, %v1099
        %v1116 = vadd.f32 %v1047, %v1100
        %v1117 = vadd.f32 %v1048, %v1101
        %v1118 = vadd.f32 %v1049, %v1102
        %v1119 = vadd.f32 %v1050, %v1103
        %v1120 = vadd.f32 %v1051, %v1104
        %v1121 = vadd.f32 %v1052, %v1105
        %v1122 = vadd.f32 %v1053, %v1106
        %v1123 = vadd.f32 %v1054, %v1107
        %v1124 = vpack.c.bf16 %v1109, %v1108
        %v1125 = vpack.c.bf16 %v1111, %v1110
        %v1126 = vpack.c.bf16 %v1113, %v1112
        %v1127 = vpack.c.bf16 %v1115, %v1114
        %v1128 = vpack.c.bf16 %v1117, %v1116
        %v1129 = vpack.c.bf16 %v1119, %v1118
        %v1130 = vpack.c.bf16 %v1121, %v1120
        %v1131 = vpack.c.bf16 %v1123, %v1122
        %v1132 = vld [vmem:[%s6] sm:$0xf]
        %v1133 = vld [vmem:[%s6 + $0x4] sm:$0xf]
        %v1134 = vld [vmem:[%s6 + $0x8] sm:$0xf]
        %v1135 = vld [vmem:[%s6 + $0xc] sm:$0xf]
        %v1136 = vld [vmem:[%s6 + $0x10] sm:$0xf]
        %v1137 = vld [vmem:[%s6 + $0x14] sm:$0xf]
        %v1138 = vld [vmem:[%s6 + $0x18] sm:$0xf]
        %v1139 = vld [vmem:[%s6 + $0x1c] sm:$0xf]
        %v1140 = vld [vmem:[%s6 + $0x20] sm:$0xf]
        %v1141 = vld [vmem:[%s6 + $0x24] sm:$0xf]
        %v1142 = vld [vmem:[%s6 + $0x28] sm:$0xf]
        %v1143 = vld [vmem:[%s6 + $0x2c] sm:$0xf]
        %v1144 = vld [vmem:[%s6 + $0x30] sm:$0xf]
        %v1145 = vld [vmem:[%s6 + $0x34] sm:$0xf]
        %v1146 = vld [vmem:[%s6 + $0x38] sm:$0xf]
        %v1147 = vld [vmem:[%s6 + $0x3c] sm:$0xf]
        %v1148 = vld [vmem:[%s7] sm:$0x1]
        %v1150 = vlaneseq
        %v1151 = vshrl.u32 %v1150, 7
        %v1152 = vsub.s32 0, %v1151
        %v1153 = vrot.slane %v1148, %v1152
        %v1171 = vunpack.c.l.b16 %v1132
        %v1172 = vunpack.c.l.b16 %v1133
        %v1173 = vunpack.c.l.b16 %v1134
        %v1174 = vunpack.c.l.b16 %v1135
        %v1175 = vunpack.c.l.b16 %v1136
        %v1176 = vunpack.c.l.b16 %v1137
        %v1177 = vunpack.c.l.b16 %v1138
        %v1178 = vunpack.c.l.b16 %v1139
        %v1179 = vunpack.c.l.b16 %v1140
        %v1180 = vunpack.c.l.b16 %v1141
        %v1181 = vunpack.c.l.b16 %v1142
        %v1182 = vunpack.c.l.b16 %v1143
        %v1183 = vunpack.c.l.b16 %v1144
        %v1184 = vunpack.c.l.b16 %v1145
        %v1185 = vunpack.c.l.b16 %v1146
        %v1186 = vunpack.c.l.b16 %v1147
        %v1187 = vpack.c.b16 %v1172, %v1171
        %v1188 = vpack.c.b16 %v1174, %v1173
        %v1189 = vpack.c.b16 %v1176, %v1175
        %v1190 = vpack.c.b16 %v1178, %v1177
        %v1191 = vpack.c.b16 %v1180, %v1179
        %v1192 = vpack.c.b16 %v1182, %v1181
        %v1193 = vpack.c.b16 %v1184, %v1183
        %v1194 = vpack.c.b16 %v1186, %v1185
        %1203 = vmatprep.subr.bf16.mxu0 0
        %1204 = vmatpush1.bf16.msra.mxu0 %v1194
        %1205 = vmatprep.subr.bf16.mxu0 0
        %1206 = vmatpush1.bf16.msra.mxu0 %v1193
        %1207 = vmatprep.subr.bf16.mxu0 0
        %1208 = vmatpush1.bf16.msra.mxu0 %v1192
        %1209 = vmatprep.subr.bf16.mxu0 0
        %1210 = vmatpush1.bf16.msra.mxu0 %v1191
        %1211 = vmatprep.subr.bf16.mxu0 0
        %1212 = vmatpush1.bf16.msra.mxu0 %v1190
        %1213 = vmatprep.subr.bf16.mxu0 0
        %1214 = vmatpush1.bf16.msra.mxu0 %v1189
        %1215 = vmatprep.subr.bf16.mxu0 0
        %1216 = vmatpush1.bf16.msra.mxu0 %v1188
        %1217 = vmatprep.subr.bf16.mxu0 0
        %1218 = vmatpush1.bf16.msra.mxu0 %v1187
        %1219 = vmatprep.subr.bf16.mxu0 0
        %1220 = vmatpush2.bf16.msra.mxu0 0
        %1221 = vmatprep.subr.bf16.mxu0 0
        %1222 = vmatpush2.bf16.msra.mxu0 0
        %1223 = vmatprep.subr.bf16.mxu0 0
        %1224 = vmatpush2.bf16.msra.mxu0 0
        %1225 = vmatprep.subr.bf16.mxu0 0
        %1226 = vmatpush2.bf16.msra.mxu0 0
        %1227 = vmatprep.subr.bf16.mxu0 0
        %1228 = vmatpush2.bf16.msra.mxu0 0
        %1229 = vmatprep.subr.bf16.mxu0 0
        %1230 = vmatpush2.bf16.msra.mxu0 0
        %1231 = vmatprep.subr.bf16.mxu0 0
        %1232 = vmatpush2.bf16.msra.mxu0 0
        %1233 = vmatprep.subr.bf16.mxu0 0
        %1234 = vmatpush2.bf16.msra.mxu0 0
        %1235 = vmatprep.mubr.bf16.mxu0 0
        %1236 = vmatmul.mubr.bf16.gmra.mxu0 %v1124
        %v1237 = vpop.f32.mrf.mxu0
        %v1238 = vadd.f32 %v1153, %v1237
        %v1239 = vpop.f32.mrf.mxu0
        %v1240 = vpop.f32.mrf.mxu0
        %v1241 = vadd.f32 %v1153, %v1240
        %v1242 = vpop.f32.mrf.mxu0
        %1243 = vmatprep.mubr.bf16.mxu0 0
        %1244 = vmatmul.mubr.bf16.gmra.mxu0 %v1125
        %v1245 = vpop.f32.mrf.mxu0
        %v1246 = vadd.f32 %v1153, %v1245
        %v1247 = vpop.f32.mrf.mxu0
        %v1248 = vpop.f32.mrf.mxu0
        %v1249 = vadd.f32 %v1153, %v1248
        %v1250 = vpop.f32.mrf.mxu0
        %1251 = vmatprep.mubr.bf16.mxu0 0
        %1252 = vmatmul.mubr.bf16.gmra.mxu0 %v1126
        %v1253 = vpop.f32.mrf.mxu0
        %v1254 = vadd.f32 %v1153, %v1253
        %v1255 = vpop.f32.mrf.mxu0
        %v1256 = vpop.f32.mrf.mxu0
        %v1257 = vadd.f32 %v1153, %v1256
        %v1258 = vpop.f32.mrf.mxu0
        %1259 = vmatprep.mubr.bf16.mxu0 0
        %1260 = vmatmul.mubr.bf16.gmra.mxu0 %v1127
        %v1261 = vpop.f32.mrf.mxu0
        %v1262 = vadd.f32 %v1153, %v1261
        %v1263 = vpop.f32.mrf.mxu0
        %v1264 = vpop.f32.mrf.mxu0
        %v1265 = vadd.f32 %v1153, %v1264
        %v1266 = vpop.f32.mrf.mxu0
        %1267 = vmatprep.mubr.bf16.mxu0 0
        %1268 = vmatmul.mubr.bf16.gmra.mxu0 %v1128
        %v1269 = vpop.f32.mrf.mxu0
        %v1270 = vadd.f32 %v1153, %v1269
        %v1271 = vpop.f32.mrf.mxu0
        %v1272 = vpop.f32.mrf.mxu0
        %v1273 = vadd.f32 %v1153, %v1272
        %v1274 = vpop.f32.mrf.mxu0
        %1275 = vmatprep.mubr.bf16.mxu0 0
        %1276 = vmatmul.mubr.bf16.gmra.mxu0 %v1129
        %v1277 = vpop.f32.mrf.mxu0
        %v1278 = vadd.f32 %v1153, %v1277
        %v1279 = vpop.f32.mrf.mxu0
        %v1280 = vpop.f32.mrf.mxu0
        %v1281 = vadd.f32 %v1153, %v1280
        %v1282 = vpop.f32.mrf.mxu0
        %1283 = vmatprep.mubr.bf16.mxu0 0
        %1284 = vmatmul.mubr.bf16.gmra.mxu0 %v1130
        %v1285 = vpop.f32.mrf.mxu0
        %v1286 = vadd.f32 %v1153, %v1285
        %v1287 = vpop.f32.mrf.mxu0
        %v1288 = vpop.f32.mrf.mxu0
        %v1289 = vadd.f32 %v1153, %v1288
        %v1290 = vpop.f32.mrf.mxu0
        %1291 = vmatprep.mubr.bf16.mxu0 0
        %1292 = vmatmul.mubr.bf16.gmra.mxu0 %v1131
        %v1293 = vpop.f32.mrf.mxu0
        %v1294 = vadd.f32 %v1153, %v1293
        %v1295 = vpop.f32.mrf.mxu0
        %v1296 = vpop.f32.mrf.mxu0
        %v1297 = vadd.f32 %v1153, %v1296
        %v1298 = vpop.f32.mrf.mxu0
        %1299 = vdwg.mxu0
        %v1300 = vpack.c.bf16 %v1241, %v1238
        %v1301 = vpack.c.bf16 %v1249, %v1246
        %v1302 = vpack.c.bf16 %v1257, %v1254
        %v1303 = vpack.c.bf16 %v1265, %v1262
        %v1304 = vpack.c.bf16 %v1273, %v1270
        %v1305 = vpack.c.bf16 %v1281, %v1278
        %v1306 = vpack.c.bf16 %v1289, %v1286
        %v1307 = vpack.c.bf16 %v1297, %v1294
        %v1308 = vtanh.bf16.pop %v1300
        %v1309 = vtanh.bf16.pop %v1301
        %v1310 = vtanh.bf16.pop %v1302
        %v1311 = vtanh.bf16.pop %v1303
        %v1312 = vtanh.bf16.pop %v1304
        %v1313 = vtanh.bf16.pop %v1305
        %v1314 = vtanh.bf16.pop %v1306
        %v1315 = vtanh.bf16.pop %v1307
        %v1316 = vunpack.c.l.bf16 %v1308
        %v1317 = vunpack.c.h.bf16 %v1308
        %v1318 = vunpack.c.l.bf16 %v1309
        %v1319 = vunpack.c.h.bf16 %v1309
        %v1320 = vunpack.c.l.bf16 %v1310
        %v1321 = vunpack.c.h.bf16 %v1310
        %v1322 = vunpack.c.l.bf16 %v1311
        %v1323 = vunpack.c.h.bf16 %v1311
        %v1324 = vunpack.c.l.bf16 %v1312
        %v1325 = vunpack.c.h.bf16 %v1312
        %v1326 = vunpack.c.l.bf16 %v1313
        %v1327 = vunpack.c.h.bf16 %v1313
        %v1328 = vunpack.c.l.bf16 %v1314
        %v1329 = vunpack.c.h.bf16 %v1314
        %v1330 = vunpack.c.l.bf16 %v1315
        %v1331 = vunpack.c.h.bf16 %v1315
        %v1332 = vld [vmem:[%s8] sm:$0x1]
        %v1334 = vlaneseq
        %v1335 = vshrl.u32 %v1334, 7
        %v1336 = vsub.s32 0, %v1335
        %v1337 = vrot.slane %v1332, %v1336
        %v1339 = vmul.f32 %v1316, %v1337
        %v1340 = vmul.f32 %v1317, %v1337
        %v1341 = vmul.f32 %v1318, %v1337
        %v1342 = vmul.f32 %v1319, %v1337
        %v1343 = vmul.f32 %v1320, %v1337
        %v1344 = vmul.f32 %v1321, %v1337
        %v1345 = vmul.f32 %v1322, %v1337
        %v1346 = vmul.f32 %v1323, %v1337
        %v1347 = vmul.f32 %v1324, %v1337
        %v1348 = vmul.f32 %v1325, %v1337
        %v1349 = vmul.f32 %v1326, %v1337
        %v1350 = vmul.f32 %v1327, %v1337
        %v1351 = vmul.f32 %v1328, %v1337
        %v1352 = vmul.f32 %v1329, %v1337
        %v1353 = vmul.f32 %v1330, %v1337
        %v1354 = vmul.f32 %v1331, %v1337
        %1355 = vadd.xlane.f32.xlu0 %v1339
        %v1356 = vpop.xlane.xlu0 %1355
        %1357 = vadd.xlane.f32.xlu0 %v1340
        %v1358 = vpop.xlane.xlu0 %1357
        %1359 = vadd.xlane.f32.xlu0 %v1341
        %v1360 = vpop.xlane.xlu0 %1359
        %1361 = vadd.xlane.f32.xlu0 %v1342
        %v1362 = vpop.xlane.xlu0 %1361
        %1363 = vadd.xlane.f32.xlu0 %v1343
        %v1364 = vpop.xlane.xlu0 %1363
        %1365 = vadd.xlane.f32.xlu0 %v1344
        %v1366 = vpop.xlane.xlu0 %1365
        %1367 = vadd.xlane.f32.xlu0 %v1345
        %v1368 = vpop.xlane.xlu0 %1367
        %1369 = vadd.xlane.f32.xlu0 %v1346
        %v1370 = vpop.xlane.xlu0 %1369
        %1371 = vadd.xlane.f32.xlu0 %v1347
        %v1372 = vpop.xlane.xlu0 %1371
        %1373 = vadd.xlane.f32.xlu0 %v1348
        %v1374 = vpop.xlane.xlu0 %1373
        %1375 = vadd.xlane.f32.xlu0 %v1349
        %v1376 = vpop.xlane.xlu0 %1375
        %1377 = vadd.xlane.f32.xlu0 %v1350
        %v1378 = vpop.xlane.xlu0 %1377
        %1379 = vadd.xlane.f32.xlu0 %v1351
        %v1380 = vpop.xlane.xlu0 %1379
        %1381 = vadd.xlane.f32.xlu0 %v1352
        %v1382 = vpop.xlane.xlu0 %1381
        %1383 = vadd.xlane.f32.xlu0 %v1353
        %v1384 = vpop.xlane.xlu0 %1383
        %1385 = vadd.xlane.f32.xlu0 %v1354
        %v1386 = vpop.xlane.xlu0 %1385
        %v1387 = vld [vmem:[#allocation2] sm:$0x1]
        %v1389 = vlaneseq
        %v1390 = vshrl.u32 %v1389, 7
        %v1391 = vsub.s32 0, %v1390
        %v1392 = vrot.slane %v1387, %v1391
        %v1394 = vadd.f32 %v1356, %v1392
        %v1395 = vadd.f32 %v1358, %v1392
        %v1396 = vadd.f32 %v1360, %v1392
        %v1397 = vadd.f32 %v1362, %v1392
        %v1398 = vadd.f32 %v1364, %v1392
        %v1399 = vadd.f32 %v1366, %v1392
        %v1400 = vadd.f32 %v1368, %v1392
        %v1401 = vadd.f32 %v1370, %v1392
        %v1402 = vadd.f32 %v1372, %v1392
        %v1403 = vadd.f32 %v1374, %v1392
        %v1404 = vadd.f32 %v1376, %v1392
        %v1405 = vadd.f32 %v1378, %v1392
        %v1406 = vadd.f32 %v1380, %v1392
        %v1407 = vadd.f32 %v1382, %v1392
        %v1408 = vadd.f32 %v1384, %v1392
        %v1409 = vadd.f32 %v1386, %v1392
        %v1410 = vld [vmem:[%s512] sm:$0xff]
        %v1411 = vcombine.high %v1410, %v1410
        %v1413 = vunpack.c.l.s4 1966171168
        %v1414 = vunpack.c.0.s8 %v1413
        %v1415 = vlaneseq
        %v1416 = vshrl.u32 %v1415, 7
        %v1417 = vsub.s32 %v1414, %v1416
        %v1418 = vrot.slane %v1410, %v1417
        %v1420 = vunpack.c.l.s4 1966171168
        %v1421 = vunpack.c.0.s8 %v1420
        %v1422 = vlaneseq
        %v1423 = vshrl.u32 %v1422, 7
        %v1424 = vsub.s32 %v1421, %v1423
        %v1425 = vrot.slane %v1411, %v1424
        %v1426 = vcombine.high %v1418, %v1418
        %v1427 = vcombine.high %v1425, %v1425
        %v1429 = vunpack.c.l.s4 1966171168
        %v1430 = vunpack.c.0.s8 %v1429
        %v1431 = vlaneseq
        %v1432 = vshrl.u32 %v1431, 7
        %v1433 = vsub.s32 %v1430, %v1432
        %v1434 = vrot.slane %v1418, %v1433
        %v1436 = vunpack.c.l.s4 1966171168
        %v1437 = vunpack.c.0.s8 %v1436
        %v1438 = vlaneseq
        %v1439 = vshrl.u32 %v1438, 7
        %v1440 = vsub.s32 %v1437, %v1439
        %v1441 = vrot.slane %v1425, %v1440
        %v1443 = vunpack.c.l.s4 1966171168
        %v1444 = vunpack.c.0.s8 %v1443
        %v1445 = vlaneseq
        %v1446 = vshrl.u32 %v1445, 7
        %v1447 = vsub.s32 %v1444, %v1446
        %v1448 = vrot.slane %v1426, %v1447
        %v1450 = vunpack.c.l.s4 1966171168
        %v1451 = vunpack.c.0.s8 %v1450
        %v1452 = vlaneseq
        %v1453 = vshrl.u32 %v1452, 7
        %v1454 = vsub.s32 %v1451, %v1453
        %v1455 = vrot.slane %v1427, %v1454
        %v1456 = vcombine.high %v1434, %v1434
        %v1457 = vcombine.high %v1441, %v1441
        %v1458 = vcombine.high %v1448, %v1448
        %v1459 = vcombine.high %v1455, %v1455
        %v1460 = vlaneseq
        %v1461 = vshrl.u32 %v1460, 7
        %v1462 = vsub.s32 0, %v1461
        %v1463 = vrot.slane %v1434, %v1462
        %v1464 = vlaneseq
        %v1465 = vshrl.u32 %v1464, 7
        %v1466 = vsub.s32 0, %v1465
        %v1467 = vrot.slane %v1448, %v1466
        %v1468 = vlaneseq
        %v1469 = vshrl.u32 %v1468, 7
        %v1470 = vsub.s32 0, %v1469
        %v1471 = vrot.slane %v1456, %v1470
        %v1472 = vlaneseq
        %v1473 = vshrl.u32 %v1472, 7
        %v1474 = vsub.s32 0, %v1473
        %v1475 = vrot.slane %v1458, %v1474
        %v1476 = vlaneseq
        %v1477 = vshrl.u32 %v1476, 7
        %v1478 = vsub.s32 0, %v1477
        %v1479 = vrot.slane %v1441, %v1478
        %v1480 = vlaneseq
        %v1481 = vshrl.u32 %v1480, 7
        %v1482 = vsub.s32 0, %v1481
        %v1483 = vrot.slane %v1455, %v1482
        %v1484 = vlaneseq
        %v1485 = vshrl.u32 %v1484, 7
        %v1486 = vsub.s32 0, %v1485
        %v1487 = vrot.slane %v1457, %v1486
        %v1488 = vlaneseq
        %v1489 = vshrl.u32 %v1488, 7
        %v1490 = vsub.s32 0, %v1489
        %v1491 = vrot.slane %v1459, %v1490
        %vm1492 = vcmp.lt.s32.totalorder %v539, %v1463
        %vm1493 = vcmp.lt.s32.totalorder %v540, %v1463
        %vm1494 = vcmp.lt.s32.totalorder %v539, %v1467
        %vm1495 = vcmp.lt.s32.totalorder %v540, %v1467
        %vm1496 = vcmp.lt.s32.totalorder %v539, %v1471
        %vm1497 = vcmp.lt.s32.totalorder %v540, %v1471
        %vm1498 = vcmp.lt.s32.totalorder %v539, %v1475
        %vm1499 = vcmp.lt.s32.totalorder %v540, %v1475
        %vm1500 = vcmp.lt.s32.totalorder %v539, %v1479
        %vm1501 = vcmp.lt.s32.totalorder %v540, %v1479
        %vm1502 = vcmp.lt.s32.totalorder %v539, %v1483
        %vm1503 = vcmp.lt.s32.totalorder %v540, %v1483
        %vm1504 = vcmp.lt.s32.totalorder %v539, %v1487
        %vm1505 = vcmp.lt.s32.totalorder %v540, %v1487
        %vm1506 = vcmp.lt.s32.totalorder %v539, %v1491
        %vm1507 = vcmp.lt.s32.totalorder %v540, %v1491
        %v1508 = vsel %vm1492, 1, 0
        %v1509 = vsel %vm1493, 1, 0
        %v1510 = vsel %vm1494, 1, 0
        %v1511 = vsel %vm1495, 1, 0
        %v1512 = vsel %vm1496, 1, 0
        %v1513 = vsel %vm1497, 1, 0
        %v1514 = vsel %vm1498, 1, 0
        %v1515 = vsel %vm1499, 1, 0
        %v1516 = vsel %vm1500, 1, 0
        %v1517 = vsel %vm1501, 1, 0
        %v1518 = vsel %vm1502, 1, 0
        %v1519 = vsel %vm1503, 1, 0
        %v1520 = vsel %vm1504, 1, 0
        %v1521 = vsel %vm1505, 1, 0
        %v1522 = vsel %vm1506, 1, 0
        %v1523 = vsel %vm1507, 1, 0
        %v1524 = vcvt.s32.f32 %v1508
        %v1525 = vcvt.s32.f32 %v1509
        %v1526 = vcvt.s32.f32 %v1510
        %v1527 = vcvt.s32.f32 %v1511
        %v1528 = vcvt.s32.f32 %v1512
        %v1529 = vcvt.s32.f32 %v1513
        %v1530 = vcvt.s32.f32 %v1514
        %v1531 = vcvt.s32.f32 %v1515
        %v1532 = vcvt.s32.f32 %v1516
        %v1533 = vcvt.s32.f32 %v1517
        %v1534 = vcvt.s32.f32 %v1518
        %v1535 = vcvt.s32.f32 %v1519
        %v1536 = vcvt.s32.f32 %v1520
        %v1537 = vcvt.s32.f32 %v1521
        %v1538 = vcvt.s32.f32 %v1522
        %v1539 = vcvt.s32.f32 %v1523
        %vm1540 = vcmp.gt.f32.partialorder %v1524, 0.0
        %vm1541 = vcmp.gt.f32.partialorder %v1525, 0.0
        %vm1542 = vcmp.gt.f32.partialorder %v1526, 0.0
        %vm1543 = vcmp.gt.f32.partialorder %v1527, 0.0
        %vm1544 = vcmp.gt.f32.partialorder %v1528, 0.0
        %vm1545 = vcmp.gt.f32.partialorder %v1529, 0.0
        %vm1546 = vcmp.gt.f32.partialorder %v1530, 0.0
        %vm1547 = vcmp.gt.f32.partialorder %v1531, 0.0
        %vm1548 = vcmp.gt.f32.partialorder %v1532, 0.0
        %vm1549 = vcmp.gt.f32.partialorder %v1533, 0.0
        %vm1550 = vcmp.gt.f32.partialorder %v1534, 0.0
        %vm1551 = vcmp.gt.f32.partialorder %v1535, 0.0
        %vm1552 = vcmp.gt.f32.partialorder %v1536, 0.0
        %vm1553 = vcmp.gt.f32.partialorder %v1537, 0.0
        %vm1554 = vcmp.gt.f32.partialorder %v1538, 0.0
        %vm1555 = vcmp.gt.f32.partialorder %v1539, 0.0
        %v1556 = vsel %vm1540, %v1394, -1e+30
        %v1557 = vsel %vm1541, %v1395, -1e+30
        %v1558 = vsel %vm1542, %v1396, -1e+30
        %v1559 = vsel %vm1543, %v1397, -1e+30
        %v1560 = vsel %vm1544, %v1398, -1e+30
        %v1561 = vsel %vm1545, %v1399, -1e+30
        %v1562 = vsel %vm1546, %v1400, -1e+30
        %v1563 = vsel %vm1547, %v1401, -1e+30
        %v1564 = vsel %vm1548, %v1402, -1e+30
        %v1565 = vsel %vm1549, %v1403, -1e+30
        %v1566 = vsel %vm1550, %v1404, -1e+30
        %v1567 = vsel %vm1551, %v1405, -1e+30
        %v1568 = vsel %vm1552, %v1406, -1e+30
        %v1569 = vsel %vm1553, %v1407, -1e+30
        %v1570 = vsel %vm1554, %v1408, -1e+30
        %v1571 = vsel %vm1555, %v1409, -1e+30
        %vm1572 = vcmask 7168
        %v1573 = vsel %vm1572, %v1556, -inf
        %v1574 = vsel %vm1572, %v1557, -inf
        %v1575 = vmax.f32 %v1573, %v1574
        %v1576 = vrot.slane %v1575, 4
        %v1577 = vmax.f32 %v1575, %v1576
        %v1578 = vrot.slane %v1577, 2
        %v1579 = vmax.f32 %v1577, %v1578
        %v1580 = vrot.slane %v1579, 1
        %v1581 = vmax.f32 %v1579, %v1580
        %v1582 = vsel %vm1572, %v1558, -inf
        %v1583 = vsel %vm1572, %v1559, -inf
        %v1584 = vmax.f32 %v1582, %v1583
        %v1585 = vrot.slane %v1584, 4
        %v1586 = vmax.f32 %v1584, %v1585
        %v1587 = vrot.slane %v1586, 2
        %v1588 = vmax.f32 %v1586, %v1587
        %v1589 = vrot.slane %v1588, 1
        %v1590 = vmax.f32 %v1588, %v1589
        %v1591 = vsel %vm1572, %v1560, -inf
        %v1592 = vsel %vm1572, %v1561, -inf
        %v1593 = vmax.f32 %v1591, %v1592
        %v1594 = vrot.slane %v1593, 4
        %v1595 = vmax.f32 %v1593, %v1594
        %v1596 = vrot.slane %v1595, 2
        %v1597 = vmax.f32 %v1595, %v1596
        %v1598 = vrot.slane %v1597, 1
        %v1599 = vmax.f32 %v1597, %v1598
        %v1600 = vsel %vm1572, %v1562, -inf
        %v1601 = vsel %vm1572, %v1563, -inf
        %v1602 = vmax.f32 %v1600, %v1601
        %v1603 = vrot.slane %v1602, 4
        %v1604 = vmax.f32 %v1602, %v1603
        %v1605 = vrot.slane %v1604, 2
        %v1606 = vmax.f32 %v1604, %v1605
        %v1607 = vrot.slane %v1606, 1
        %v1608 = vmax.f32 %v1606, %v1607
        %v1609 = vsel %vm1572, %v1564, -inf
        %v1610 = vsel %vm1572, %v1565, -inf
        %v1611 = vmax.f32 %v1609, %v1610
        %v1612 = vrot.slane %v1611, 4
        %v1613 = vmax.f32 %v1611, %v1612
        %v1614 = vrot.slane %v1613, 2
        %v1615 = vmax.f32 %v1613, %v1614
        %v1616 = vrot.slane %v1615, 1
        %v1617 = vmax.f32 %v1615, %v1616
        %v1618 = vsel %vm1572, %v1566, -inf
        %v1619 = vsel %vm1572, %v1567, -inf
        %v1620 = vmax.f32 %v1618, %v1619
        %v1621 = vrot.slane %v1620, 4
        %v1622 = vmax.f32 %v1620, %v1621
        %v1623 = vrot.slane %v1622, 2
        %v1624 = vmax.f32 %v1622, %v1623
        %v1625 = vrot.slane %v1624, 1
        %v1626 = vmax.f32 %v1624, %v1625
        %v1627 = vsel %vm1572, %v1568, -inf
        %v1628 = vsel %vm1572, %v1569, -inf
        %v1629 = vmax.f32 %v1627, %v1628
        %v1630 = vrot.slane %v1629, 4
        %v1631 = vmax.f32 %v1629, %v1630
        %v1632 = vrot.slane %v1631, 2
        %v1633 = vmax.f32 %v1631, %v1632
        %v1634 = vrot.slane %v1633, 1
        %v1635 = vmax.f32 %v1633, %v1634
        %v1636 = vsel %vm1572, %v1570, -inf
        %v1637 = vsel %vm1572, %v1571, -inf
        %v1638 = vmax.f32 %v1636, %v1637
        %v1639 = vrot.slane %v1638, 4
        %v1640 = vmax.f32 %v1638, %v1639
        %v1641 = vrot.slane %v1640, 2
        %v1642 = vmax.f32 %v1640, %v1641
        %v1643 = vrot.slane %v1642, 1
        %v1644 = vmax.f32 %v1642, %v1643
        %v1645 = vmax.f32 %v1581, 0.0
        %v1646 = vmax.f32 %v1590, 0.0
        %v1647 = vmax.f32 %v1599, 0.0
        %v1648 = vmax.f32 %v1608, 0.0
        %v1649 = vmax.f32 %v1617, 0.0
        %v1650 = vmax.f32 %v1626, 0.0
        %v1651 = vmax.f32 %v1635, 0.0
        %v1652 = vmax.f32 %v1644, 0.0
        %v1653 = vsub.f32 %v1394, %v1645
        %v1654 = vsub.f32 %v1395, %v1645
        %v1655 = vsub.f32 %v1396, %v1646
        %v1656 = vsub.f32 %v1397, %v1646
        %v1657 = vsub.f32 %v1398, %v1647
        %v1658 = vsub.f32 %v1399, %v1647
        %v1659 = vsub.f32 %v1400, %v1648
        %v1660 = vsub.f32 %v1401, %v1648
        %v1661 = vsub.f32 %v1402, %v1649
        %v1662 = vsub.f32 %v1403, %v1649
        %v1663 = vsub.f32 %v1404, %v1650
        %v1664 = vsub.f32 %v1405, %v1650
        %v1665 = vsub.f32 %v1406, %v1651
        %v1666 = vsub.f32 %v1407, %v1651
        %v1667 = vsub.f32 %v1408, %v1652
        %v1668 = vsub.f32 %v1409, %v1652
        %v1669 = vmul.f32 %v1653, 1.442695
        %v1670 = vpow.pop %v1669
        %v1671 = vmul.f32 %v1654, 1.442695
        %v1672 = vpow.pop %v1671
        %v1673 = vmul.f32 %v1655, 1.442695
        %v1674 = vpow.pop %v1673
        %v1675 = vmul.f32 %v1656, 1.442695
        %v1676 = vpow.pop %v1675
        %v1677 = vmul.f32 %v1657, 1.442695
        %v1678 = vpow.pop %v1677
        %v1679 = vmul.f32 %v1658, 1.442695
        %v1680 = vpow.pop %v1679
        %v1681 = vmul.f32 %v1659, 1.442695
        %v1682 = vpow.pop %v1681
        %v1683 = vmul.f32 %v1660, 1.442695
        %v1684 = vpow.pop %v1683
        %v1685 = vmul.f32 %v1661, 1.442695
        %v1686 = vpow.pop %v1685
        %v1687 = vmul.f32 %v1662, 1.442695
        %v1688 = vpow.pop %v1687
        %v1689 = vmul.f32 %v1663, 1.442695
        %v1690 = vpow.pop %v1689
        %v1691 = vmul.f32 %v1664, 1.442695
        %v1692 = vpow.pop %v1691
        %v1693 = vmul.f32 %v1665, 1.442695
        %v1694 = vpow.pop %v1693
        %v1695 = vmul.f32 %v1666, 1.442695
        %v1696 = vpow.pop %v1695
        %v1697 = vmul.f32 %v1667, 1.442695
        %v1698 = vpow.pop %v1697
        %v1699 = vmul.f32 %v1668, 1.442695
        %v1700 = vpow.pop %v1699
        %v1701 = vmul.f32 %v1670, %v1524
        %v1702 = vmul.f32 %v1672, %v1525
        %v1703 = vmul.f32 %v1674, %v1526
        %v1704 = vmul.f32 %v1676, %v1527
        %v1705 = vmul.f32 %v1678, %v1528
        %v1706 = vmul.f32 %v1680, %v1529
        %v1707 = vmul.f32 %v1682, %v1530
        %v1708 = vmul.f32 %v1684, %v1531
        %v1709 = vmul.f32 %v1686, %v1532
        %v1710 = vmul.f32 %v1688, %v1533
        %v1711 = vmul.f32 %v1690, %v1534
        %v1712 = vmul.f32 %v1692, %v1535
        %v1713 = vmul.f32 %v1694, %v1536
        %v1714 = vmul.f32 %v1696, %v1537
        %v1715 = vmul.f32 %v1698, %v1538
        %v1716 = vmul.f32 %v1700, %v1539
        %v1717 = vsel %vm1572, %v1701, 0.0
        %v1718 = vsel %vm1572, %v1702, 0.0
        %v1719 = vadd.f32 %v1717, %v1718
        %v1720 = vrot.slane %v1719, 4
        %v1721 = vadd.f32 %v1719, %v1720
        %v1722 = vrot.slane %v1721, 2
        %v1723 = vadd.f32 %v1721, %v1722
        %v1724 = vrot.slane %v1723, 1
        %v1725 = vadd.f32 %v1723, %v1724
        %v1726 = vsel %vm1572, %v1703, 0.0
        %v1727 = vsel %vm1572, %v1704, 0.0
        %v1728 = vadd.f32 %v1726, %v1727
        %v1729 = vrot.slane %v1728, 4
        %v1730 = vadd.f32 %v1728, %v1729
        %v1731 = vrot.slane %v1730, 2
        %v1732 = vadd.f32 %v1730, %v1731
        %v1733 = vrot.slane %v1732, 1
        %v1734 = vadd.f32 %v1732, %v1733
        %v1735 = vsel %vm1572, %v1705, 0.0
        %v1736 = vsel %vm1572, %v1706, 0.0
        %v1737 = vadd.f32 %v1735, %v1736
        %v1738 = vrot.slane %v1737, 4
        %v1739 = vadd.f32 %v1737, %v1738
        %v1740 = vrot.slane %v1739, 2
        %v1741 = vadd.f32 %v1739, %v1740
        %v1742 = vrot.slane %v1741, 1
        %v1743 = vadd.f32 %v1741, %v1742
        %v1744 = vsel %vm1572, %v1707, 0.0
        %v1745 = vsel %vm1572, %v1708, 0.0
        %v1746 = vadd.f32 %v1744, %v1745
        %v1747 = vrot.slane %v1746, 4
        %v1748 = vadd.f32 %v1746, %v1747
        %v1749 = vrot.slane %v1748, 2
        %v1750 = vadd.f32 %v1748, %v1749
        %v1751 = vrot.slane %v1750, 1
        %v1752 = vadd.f32 %v1750, %v1751
        %v1753 = vsel %vm1572, %v1709, 0.0
        %v1754 = vsel %vm1572, %v1710, 0.0
        %v1755 = vadd.f32 %v1753, %v1754
        %v1756 = vrot.slane %v1755, 4
        %v1757 = vadd.f32 %v1755, %v1756
        %v1758 = vrot.slane %v1757, 2
        %v1759 = vadd.f32 %v1757, %v1758
        %v1760 = vrot.slane %v1759, 1
        %v1761 = vadd.f32 %v1759, %v1760
        %v1762 = vsel %vm1572, %v1711, 0.0
        %v1763 = vsel %vm1572, %v1712, 0.0
        %v1764 = vadd.f32 %v1762, %v1763
        %v1765 = vrot.slane %v1764, 4
        %v1766 = vadd.f32 %v1764, %v1765
        %v1767 = vrot.slane %v1766, 2
        %v1768 = vadd.f32 %v1766, %v1767
        %v1769 = vrot.slane %v1768, 1
        %v1770 = vadd.f32 %v1768, %v1769
        %v1771 = vsel %vm1572, %v1713, 0.0
        %v1772 = vsel %vm1572, %v1714, 0.0
        %v1773 = vadd.f32 %v1771, %v1772
        %v1774 = vrot.slane %v1773, 4
        %v1775 = vadd.f32 %v1773, %v1774
        %v1776 = vrot.slane %v1775, 2
        %v1777 = vadd.f32 %v1775, %v1776
        %v1778 = vrot.slane %v1777, 1
        %v1779 = vadd.f32 %v1777, %v1778
        %v1780 = vsel %vm1572, %v1715, 0.0
        %v1781 = vsel %vm1572, %v1716, 0.0
        %v1782 = vadd.f32 %v1780, %v1781
        %v1783 = vrot.slane %v1782, 4
        %v1784 = vadd.f32 %v1782, %v1783
        %v1785 = vrot.slane %v1784, 2
        %v1786 = vadd.f32 %v1784, %v1785
        %v1787 = vrot.slane %v1786, 1
        %v1788 = vadd.f32 %v1786, %v1787
        %v1789 = vadd.f32 %v1725, 1e-08
        %v1790 = vadd.f32 %v1734, 1e-08
        %v1791 = vadd.f32 %v1743, 1e-08
        %v1792 = vadd.f32 %v1752, 1e-08
        %v1793 = vadd.f32 %v1761, 1e-08
        %v1794 = vadd.f32 %v1770, 1e-08
        %v1795 = vadd.f32 %v1779, 1e-08
        %v1796 = vadd.f32 %v1788, 1e-08
        %v1797 = vrcp.pop %v1789
        %v1798 = vmul.f32 %v1701, %v1797
        %v1799 = vmul.f32 %v1702, %v1797
        %v1800 = vrcp.pop %v1790
        %v1801 = vmul.f32 %v1703, %v1800
        %v1802 = vmul.f32 %v1704, %v1800
        %v1803 = vrcp.pop %v1791
        %v1804 = vmul.f32 %v1705, %v1803
        %v1805 = vmul.f32 %v1706, %v1803
        %v1806 = vrcp.pop %v1792
        %v1807 = vmul.f32 %v1707, %v1806
        %v1808 = vmul.f32 %v1708, %v1806
        %v1809 = vrcp.pop %v1793
        %v1810 = vmul.f32 %v1709, %v1809
        %v1811 = vmul.f32 %v1710, %v1809
        %v1812 = vrcp.pop %v1794
        %v1813 = vmul.f32 %v1711, %v1812
        %v1814 = vmul.f32 %v1712, %v1812
        %v1815 = vrcp.pop %v1795
        %v1816 = vmul.f32 %v1713, %v1815
        %v1817 = vmul.f32 %v1714, %v1815
        %v1818 = vrcp.pop %v1796
        %v1819 = vmul.f32 %v1715, %v1818
        %v1820 = vmul.f32 %v1716, %v1818
        %1822 = vset.pattern.permute.xlu0 0
        %1823 = vperm.xlu0 %1822, %v1798
        %v1824 = vpop.permute.xlu0 %1823
        %1827 = vset.pattern.permute.xlu0 0
        %1828 = vperm.xlu0 %1827, %v1799
        %v1829 = vpop.permute.xlu0 %1828
        %1832 = vset.pattern.permute.xlu0 0
        %1833 = vperm.xlu0 %1832, %v1801
        %v1834 = vpop.permute.xlu0 %1833
        %1837 = vset.pattern.permute.xlu0 0
        %1838 = vperm.xlu0 %1837, %v1802
        %v1839 = vpop.permute.xlu0 %1838
        %1842 = vset.pattern.permute.xlu0 0
        %1843 = vperm.xlu0 %1842, %v1804
        %v1844 = vpop.permute.xlu0 %1843
        %1847 = vset.pattern.permute.xlu0 0
        %1848 = vperm.xlu0 %1847, %v1805
        %v1849 = vpop.permute.xlu0 %1848
        %1852 = vset.pattern.permute.xlu0 0
        %1853 = vperm.xlu0 %1852, %v1807
        %v1854 = vpop.permute.xlu0 %1853
        %1857 = vset.pattern.permute.xlu0 0
        %1858 = vperm.xlu0 %1857, %v1808
        %v1859 = vpop.permute.xlu0 %1858
        %1862 = vset.pattern.permute.xlu0 0
        %1863 = vperm.xlu0 %1862, %v1810
        %v1864 = vpop.permute.xlu0 %1863
        %1867 = vset.pattern.permute.xlu0 0
        %1868 = vperm.xlu0 %1867, %v1811
        %v1869 = vpop.permute.xlu0 %1868
        %1872 = vset.pattern.permute.xlu0 0
        %1873 = vperm.xlu0 %1872, %v1813
        %v1874 = vpop.permute.xlu0 %1873
        %1877 = vset.pattern.permute.xlu0 0
        %1878 = vperm.xlu0 %1877, %v1814
        %v1879 = vpop.permute.xlu0 %1878
        %1882 = vset.pattern.permute.xlu0 0
        %1883 = vperm.xlu0 %1882, %v1816
        %v1884 = vpop.permute.xlu0 %1883
        %1887 = vset.pattern.permute.xlu0 0
        %1888 = vperm.xlu0 %1887, %v1817
        %v1889 = vpop.permute.xlu0 %1888
        %1892 = vset.pattern.permute.xlu0 0
        %1893 = vperm.xlu0 %1892, %v1819
        %v1894 = vpop.permute.xlu0 %1893
        %1897 = vset.pattern.permute.xlu0 0
        %1898 = vperm.xlu0 %1897, %v1820
        %v1899 = vpop.permute.xlu0 %1898
        %v1901 = vmul.f32 %v1108, %v1824
        %v1902 = vmul.f32 %v1109, %v1829
        %v1903 = vmul.f32 %v1110, %v1834
        %v1904 = vmul.f32 %v1111, %v1839
        %v1905 = vmul.f32 %v1112, %v1844
        %v1906 = vmul.f32 %v1113, %v1849
        %v1907 = vmul.f32 %v1114, %v1854
        %v1908 = vmul.f32 %v1115, %v1859
        %v1909 = vmul.f32 %v1116, %v1864
        %v1910 = vmul.f32 %v1117, %v1869
        %v1911 = vmul.f32 %v1118, %v1874
        %v1912 = vmul.f32 %v1119, %v1879
        %v1913 = vmul.f32 %v1120, %v1884
        %v1914 = vmul.f32 %v1121, %v1889
        %v1915 = vmul.f32 %v1122, %v1894
        %v1916 = vmul.f32 %v1123, %v1899
        %v1917 = vadd.f32 %v1901, %v1902
        %v1918 = vrot.slane %v1917, 4
        %v1919 = vadd.f32 %v1917, %v1918
        %v1920 = vrot.slane %v1919, 2
        %v1921 = vadd.f32 %v1919, %v1920
        %v1922 = vrot.slane %v1921, 1
        %v1923 = vadd.f32 %v1921, %v1922
        %v1924 = vadd.f32 %v1903, %v1904
        %v1925 = vrot.slane %v1924, 4
        %v1926 = vadd.f32 %v1924, %v1925
        %v1927 = vrot.slane %v1926, 2
        %v1928 = vadd.f32 %v1926, %v1927
        %v1929 = vrot.slane %v1928, 1
        %v1930 = vadd.f32 %v1928, %v1929
        %v1931 = vadd.f32 %v1905, %v1906
        %v1932 = vrot.slane %v1931, 4
        %v1933 = vadd.f32 %v1931, %v1932
        %v1934 = vrot.slane %v1933, 2
        %v1935 = vadd.f32 %v1933, %v1934
        %v1936 = vrot.slane %v1935, 1
        %v1937 = vadd.f32 %v1935, %v1936
        %v1938 = vadd.f32 %v1907, %v1908
        %v1939 = vrot.slane %v1938, 4
        %v1940 = vadd.f32 %v1938, %v1939
        %v1941 = vrot.slane %v1940, 2
        %v1942 = vadd.f32 %v1940, %v1941
        %v1943 = vrot.slane %v1942, 1
        %v1944 = vadd.f32 %v1942, %v1943
        %v1945 = vadd.f32 %v1909, %v1910
        %v1946 = vrot.slane %v1945, 4
        %v1947 = vadd.f32 %v1945, %v1946
        %v1948 = vrot.slane %v1947, 2
        %v1949 = vadd.f32 %v1947, %v1948
        %v1950 = vrot.slane %v1949, 1
        %v1951 = vadd.f32 %v1949, %v1950
        %v1952 = vadd.f32 %v1911, %v1912
        %v1953 = vrot.slane %v1952, 4
        %v1954 = vadd.f32 %v1952, %v1953
        %v1955 = vrot.slane %v1954, 2
        %v1956 = vadd.f32 %v1954, %v1955
        %v1957 = vrot.slane %v1956, 1
        %v1958 = vadd.f32 %v1956, %v1957
        %v1959 = vadd.f32 %v1913, %v1914
        %v1960 = vrot.slane %v1959, 4
        %v1961 = vadd.f32 %v1959, %v1960
        %v1962 = vrot.slane %v1961, 2
        %v1963 = vadd.f32 %v1961, %v1962
        %v1964 = vrot.slane %v1963, 1
        %v1965 = vadd.f32 %v1963, %v1964
        %v1966 = vadd.f32 %v1915, %v1916
        %v1967 = vrot.slane %v1966, 4
        %v1968 = vadd.f32 %v1966, %v1967
        %v1969 = vrot.slane %v1968, 2
        %v1970 = vadd.f32 %v1968, %v1969
        %v1971 = vrot.slane %v1970, 1
        %v1972 = vadd.f32 %v1970, %v1971
        %v1973 = vpack.c.bf16 %v1923, %v1923
        %v1974 = vpack.c.bf16 %v1930, %v1930
        %v1975 = vpack.c.bf16 %v1937, %v1937
        %v1976 = vpack.c.bf16 %v1944, %v1944
        %v1977 = vpack.c.bf16 %v1951, %v1951
        %v1978 = vpack.c.bf16 %v1958, %v1958
        %v1979 = vpack.c.bf16 %v1965, %v1965
        %v1980 = vpack.c.bf16 %v1972, %v1972
        %v1981 = vld [vmem:[%s10] sm:$0xf]
        %v1982 = vld [vmem:[%s10 + $0x4] sm:$0xf]
        %v1983 = vld [vmem:[%s10 + $0x8] sm:$0xf]
        %v1984 = vld [vmem:[%s10 + $0xc] sm:$0xf]
        %v1985 = vld [vmem:[%s10 + $0x10] sm:$0xf]
        %v1986 = vld [vmem:[%s10 + $0x14] sm:$0xf]
        %v1987 = vld [vmem:[%s10 + $0x18] sm:$0xf]
        %v1988 = vld [vmem:[%s10 + $0x1c] sm:$0xf]
        %v1989 = vld [vmem:[%s10 + $0x20] sm:$0xf]
        %v1990 = vld [vmem:[%s10 + $0x24] sm:$0xf]
        %v1991 = vld [vmem:[%s10 + $0x28] sm:$0xf]
        %v1992 = vld [vmem:[%s10 + $0x2c] sm:$0xf]
        %v1993 = vld [vmem:[%s10 + $0x30] sm:$0xf]
        %v1994 = vld [vmem:[%s10 + $0x34] sm:$0xf]
        %v1995 = vld [vmem:[%s10 + $0x38] sm:$0xf]
        %v1996 = vld [vmem:[%s10 + $0x3c] sm:$0xf]
        %v1997 = vld [vmem:[%s516] sm:$0xf]
        %v1998 = vld [vmem:[%s11] sm:$0xf]
        %v1999 = vld [vmem:[%s11 + $0x4] sm:$0xf]
        %v2000 = vld [vmem:[%s11 + $0x8] sm:$0xf]
        %v2001 = vld [vmem:[%s11 + $0xc] sm:$0xf]
        %v2002 = vld [vmem:[%s11 + $0x10] sm:$0xf]
        %v2003 = vld [vmem:[%s11 + $0x14] sm:$0xf]
        %v2004 = vld [vmem:[%s11 + $0x18] sm:$0xf]
        %v2005 = vld [vmem:[%s11 + $0x1c] sm:$0xf]
        %v2006 = vld [vmem:[%s11 + $0x20] sm:$0xf]
        %v2007 = vld [vmem:[%s11 + $0x24] sm:$0xf]
        %v2008 = vld [vmem:[%s11 + $0x28] sm:$0xf]
        %v2009 = vld [vmem:[%s11 + $0x2c] sm:$0xf]
        %v2010 = vld [vmem:[%s11 + $0x30] sm:$0xf]
        %v2011 = vld [vmem:[%s11 + $0x34] sm:$0xf]
        %v2012 = vld [vmem:[%s11 + $0x38] sm:$0xf]
        %v2013 = vld [vmem:[%s11 + $0x3c] sm:$0xf]
        %v2030 = vunpack.c.l.b16 %v1998
        %v2031 = vunpack.c.l.b16 %v1999
        %v2032 = vunpack.c.l.b16 %v2000
        %v2033 = vunpack.c.l.b16 %v2001
        %v2034 = vunpack.c.l.b16 %v2002
        %v2035 = vunpack.c.l.b16 %v2003
        %v2036 = vunpack.c.l.b16 %v2004
        %v2037 = vunpack.c.l.b16 %v2005
        %v2038 = vunpack.c.l.b16 %v2006
        %v2039 = vunpack.c.l.b16 %v2007
        %v2040 = vunpack.c.l.b16 %v2008
        %v2041 = vunpack.c.l.b16 %v2009
        %v2042 = vunpack.c.l.b16 %v2010
        %v2043 = vunpack.c.l.b16 %v2011
        %v2044 = vunpack.c.l.b16 %v2012
        %v2045 = vunpack.c.l.b16 %v2013
        %v2046 = vpack.c.b16 %v2031, %v2030
        %v2047 = vpack.c.b16 %v2033, %v2032
        %v2048 = vpack.c.b16 %v2035, %v2034
        %v2049 = vpack.c.b16 %v2037, %v2036
        %v2050 = vpack.c.b16 %v2039, %v2038
        %v2051 = vpack.c.b16 %v2041, %v2040
        %v2052 = vpack.c.b16 %v2043, %v2042
        %v2053 = vpack.c.b16 %v2045, %v2044
        %2062 = vmatprep.subr.bf16.mxu0 0
        %2063 = vmatpush1.bf16.msra.mxu0 %v2053
        %2064 = vmatprep.subr.bf16.mxu0 0
        %2065 = vmatpush1.bf16.msra.mxu0 %v2052
        %2066 = vmatprep.subr.bf16.mxu0 0
        %2067 = vmatpush1.bf16.msra.mxu0 %v2051
        %2068 = vmatprep.subr.bf16.mxu0 0
        %2069 = vmatpush1.bf16.msra.mxu0 %v2050
        %2070 = vmatprep.subr.bf16.mxu0 0
        %2071 = vmatpush1.bf16.msra.mxu0 %v2049
        %2072 = vmatprep.subr.bf16.mxu0 0
        %2073 = vmatpush1.bf16.msra.mxu0 %v2048
        %2074 = vmatprep.subr.bf16.mxu0 0
        %2075 = vmatpush1.bf16.msra.mxu0 %v2047
        %2076 = vmatprep.subr.bf16.mxu0 0
        %2077 = vmatpush1.bf16.msra.mxu0 %v2046
        %2078 = vmatprep.subr.bf16.mxu0 0
        %2079 = vmatpush2.bf16.msra.mxu0 0
        %2080 = vmatprep.subr.bf16.mxu0 0
        %2081 = vmatpush2.bf16.msra.mxu0 0
        %2082 = vmatprep.subr.bf16.mxu0 0
        %2083 = vmatpush2.bf16.msra.mxu0 0
        %2084 = vmatprep.subr.bf16.mxu0 0
        %2085 = vmatpush2.bf16.msra.mxu0 0
        %2086 = vmatprep.subr.bf16.mxu0 0
        %2087 = vmatpush2.bf16.msra.mxu0 0
        %2088 = vmatprep.subr.bf16.mxu0 0
        %2089 = vmatpush2.bf16.msra.mxu0 0
        %2090 = vmatprep.subr.bf16.mxu0 0
        %2091 = vmatpush2.bf16.msra.mxu0 0
        %2092 = vmatprep.subr.bf16.mxu0 0
        %2093 = vmatpush2.bf16.msra.mxu0 0
        %2094 = vmatprep.mubr.bf16.mxu0 0
        %2095 = vmatmul.mubr.bf16.gmra.mxu0 %v1997
        %v2096 = vpop.f32.mrf.mxu0
        %v2097 = vadd.f32 0.0, %v2096
        %v2098 = vpop.f32.mrf.mxu0
        %v2099 = vpop.f32.mrf.mxu0
        %v2100 = vpop.f32.mrf.mxu0
        %2101 = vdwg.mxu0
        %v2110 = vunpack.c.l.b16 %v1973
        %v2111 = vunpack.c.l.b16 %v1974
        %v2112 = vunpack.c.l.b16 %v1975
        %v2113 = vunpack.c.l.b16 %v1976
        %v2114 = vunpack.c.l.b16 %v1977
        %v2115 = vunpack.c.l.b16 %v1978
        %v2116 = vunpack.c.l.b16 %v1979
        %v2117 = vunpack.c.l.b16 %v1980
        %vm2118 = vcmask 1041409
        %v2119 = vsel %vm2118, %v2111, %v2110
        %vm2120 = vcmask 1042434
        %v2121 = vsel %vm2120, %v2112, %v2119
        %vm2122 = vcmask 1043459
        %v2123 = vsel %vm2122, %v2113, %v2121
        %vm2124 = vcmask 1044484
        %v2125 = vsel %vm2124, %v2114, %v2123
        %vm2126 = vcmask 1045509
        %v2127 = vsel %vm2126, %v2115, %v2125
        %vm2128 = vcmask 1046534
        %v2129 = vsel %vm2128, %v2116, %v2127
        %vm2130 = vcmask 1047559
        %v2131 = vsel %vm2130, %v2117, %v2129
        %v2132 = vpack.c.b16 %v2131, %v2131
        %v2150 = vunpack.c.l.b16 %v1981
        %v2151 = vunpack.c.l.b16 %v1982
        %v2152 = vunpack.c.l.b16 %v1983
        %v2153 = vunpack.c.l.b16 %v1984
        %v2154 = vunpack.c.l.b16 %v1985
        %v2155 = vunpack.c.l.b16 %v1986
        %v2156 = vunpack.c.l.b16 %v1987
        %v2157 = vunpack.c.l.b16 %v1988
        %v2158 = vunpack.c.l.b16 %v1989
        %v2159 = vunpack.c.l.b16 %v1990
        %v2160 = vunpack.c.l.b16 %v1991
        %v2161 = vunpack.c.l.b16 %v1992
        %v2162 = vunpack.c.l.b16 %v1993
        %v2163 = vunpack.c.l.b16 %v1994
        %v2164 = vunpack.c.l.b16 %v1995
        %v2165 = vunpack.c.l.b16 %v1996
        %v2166 = vpack.c.b16 %v2151, %v2150
        %v2167 = vpack.c.b16 %v2153, %v2152
        %v2168 = vpack.c.b16 %v2155, %v2154
        %v2169 = vpack.c.b16 %v2157, %v2156
        %v2170 = vpack.c.b16 %v2159, %v2158
        %v2171 = vpack.c.b16 %v2161, %v2160
        %v2172 = vpack.c.b16 %v2163, %v2162
        %v2173 = vpack.c.b16 %v2165, %v2164
        %2182 = vmatprep.subr.bf16.mxu0 0
        %2183 = vmatpush1.bf16.msra.mxu0 %v2173
        %2184 = vmatprep.subr.bf16.mxu0 0
        %2185 = vmatpush1.bf16.msra.mxu0 %v2172
        %2186 = vmatprep.subr.bf16.mxu0 0
        %2187 = vmatpush1.bf16.msra.mxu0 %v2171
        %2188 = vmatprep.subr.bf16.mxu0 0
        %2189 = vmatpush1.bf16.msra.mxu0 %v2170
        %2190 = vmatprep.subr.bf16.mxu0 0
        %2191 = vmatpush1.bf16.msra.mxu0 %v2169
        %2192 = vmatprep.subr.bf16.mxu0 0
        %2193 = vmatpush1.bf16.msra.mxu0 %v2168
        %2194 = vmatprep.subr.bf16.mxu0 0
        %2195 = vmatpush1.bf16.msra.mxu0 %v2167
        %2196 = vmatprep.subr.bf16.mxu0 0
        %2197 = vmatpush1.bf16.msra.mxu0 %v2166
        %2198 = vmatprep.subr.bf16.mxu0 0
        %2199 = vmatpush2.bf16.msra.mxu0 0
        %2200 = vmatprep.subr.bf16.mxu0 0
        %2201 = vmatpush2.bf16.msra.mxu0 0
        %2202 = vmatprep.subr.bf16.mxu0 0
        %2203 = vmatpush2.bf16.msra.mxu0 0
        %2204 = vmatprep.subr.bf16.mxu0 0
        %2205 = vmatpush2.bf16.msra.mxu0 0
        %2206 = vmatprep.subr.bf16.mxu0 0
        %2207 = vmatpush2.bf16.msra.mxu0 0
        %2208 = vmatprep.subr.bf16.mxu0 0
        %2209 = vmatpush2.bf16.msra.mxu0 0
        %2210 = vmatprep.subr.bf16.mxu0 0
        %2211 = vmatpush2.bf16.msra.mxu0 0
        %2212 = vmatprep.subr.bf16.mxu0 0
        %2213 = vmatpush2.bf16.msra.mxu0 0
        %2214 = vmatprep.mubr.bf16.mxu0 0
        %2215 = vmatmul.mubr.bf16.gmra.mxu0 %v2132
        %v2216 = vpop.f32.mrf.mxu0
        %v2217 = vadd.f32 %v2097, %v2216
        %v2218 = vpop.f32.mrf.mxu0
        %v2219 = vpop.f32.mrf.mxu0
        %v2220 = vpop.f32.mrf.mxu0
        %2221 = vdwg.mxu0
        %v2222 = vld [vmem:[%s520] sm:$0xf]
        %v2223 = vld [vmem:[%s12] sm:$0xf]
        %v2224 = vld [vmem:[%s12 + $0x4] sm:$0xf]
        %v2225 = vld [vmem:[%s12 + $0x8] sm:$0xf]
        %v2226 = vld [vmem:[%s12 + $0xc] sm:$0xf]
        %v2227 = vld [vmem:[%s12 + $0x10] sm:$0xf]
        %v2228 = vld [vmem:[%s12 + $0x14] sm:$0xf]
        %v2229 = vld [vmem:[%s12 + $0x18] sm:$0xf]
        %v2230 = vld [vmem:[%s12 + $0x1c] sm:$0xf]
        %v2231 = vld [vmem:[%s12 + $0x20] sm:$0xf]
        %v2232 = vld [vmem:[%s12 + $0x24] sm:$0xf]
        %v2233 = vld [vmem:[%s12 + $0x28] sm:$0xf]
        %v2234 = vld [vmem:[%s12 + $0x2c] sm:$0xf]
        %v2235 = vld [vmem:[%s12 + $0x30] sm:$0xf]
        %v2236 = vld [vmem:[%s12 + $0x34] sm:$0xf]
        %v2237 = vld [vmem:[%s12 + $0x38] sm:$0xf]
        %v2238 = vld [vmem:[%s12 + $0x3c] sm:$0xf]
        %v2255 = vunpack.c.l.b16 %v2223
        %v2256 = vunpack.c.l.b16 %v2224
        %v2257 = vunpack.c.l.b16 %v2225
        %v2258 = vunpack.c.l.b16 %v2226
        %v2259 = vunpack.c.l.b16 %v2227
        %v2260 = vunpack.c.l.b16 %v2228
        %v2261 = vunpack.c.l.b16 %v2229
        %v2262 = vunpack.c.l.b16 %v2230
        %v2263 = vunpack.c.l.b16 %v2231
        %v2264 = vunpack.c.l.b16 %v2232
        %v2265 = vunpack.c.l.b16 %v2233
        %v2266 = vunpack.c.l.b16 %v2234
        %v2267 = vunpack.c.l.b16 %v2235
        %v2268 = vunpack.c.l.b16 %v2236
        %v2269 = vunpack.c.l.b16 %v2237
        %v2270 = vunpack.c.l.b16 %v2238
        %v2271 = vpack.c.b16 %v2256, %v2255
        %v2272 = vpack.c.b16 %v2258, %v2257
        %v2273 = vpack.c.b16 %v2260, %v2259
        %v2274 = vpack.c.b16 %v2262, %v2261
        %v2275 = vpack.c.b16 %v2264, %v2263
        %v2276 = vpack.c.b16 %v2266, %v2265
        %v2277 = vpack.c.b16 %v2268, %v2267
        %v2278 = vpack.c.b16 %v2270, %v2269
        %2287 = vmatprep.subr.bf16.mxu0 0
        %2288 = vmatpush1.bf16.msra.mxu0 %v2278
        %2289 = vmatprep.subr.bf16.mxu0 0
        %2290 = vmatpush1.bf16.msra.mxu0 %v2277
        %2291 = vmatprep.subr.bf16.mxu0 0
        %2292 = vmatpush1.bf16.msra.mxu0 %v2276
        %2293 = vmatprep.subr.bf16.mxu0 0
        %2294 = vmatpush1.bf16.msra.mxu0 %v2275
        %2295 = vmatprep.subr.bf16.mxu0 0
        %2296 = vmatpush1.bf16.msra.mxu0 %v2274
        %2297 = vmatprep.subr.bf16.mxu0 0
        %2298 = vmatpush1.bf16.msra.mxu0 %v2273
        %2299 = vmatprep.subr.bf16.mxu0 0
        %2300 = vmatpush1.bf16.msra.mxu0 %v2272
        %2301 = vmatprep.subr.bf16.mxu0 0
        %2302 = vmatpush1.bf16.msra.mxu0 %v2271
        %2303 = vmatprep.subr.bf16.mxu0 0
        %2304 = vmatpush2.bf16.msra.mxu0 0
        %2305 = vmatprep.subr.bf16.mxu0 0
        %2306 = vmatpush2.bf16.msra.mxu0 0
        %2307 = vmatprep.subr.bf16.mxu0 0
        %2308 = vmatpush2.bf16.msra.mxu0 0
        %2309 = vmatprep.subr.bf16.mxu0 0
        %2310 = vmatpush2.bf16.msra.mxu0 0
        %2311 = vmatprep.subr.bf16.mxu0 0
        %2312 = vmatpush2.bf16.msra.mxu0 0
        %2313 = vmatprep.subr.bf16.mxu0 0
        %2314 = vmatpush2.bf16.msra.mxu0 0
        %2315 = vmatprep.subr.bf16.mxu0 0
        %2316 = vmatpush2.bf16.msra.mxu0 0
        %2317 = vmatprep.subr.bf16.mxu0 0
        %2318 = vmatpush2.bf16.msra.mxu0 0
        %2319 = vmatprep.mubr.bf16.mxu0 0
        %2320 = vmatmul.mubr.bf16.gmra.mxu0 %v2222
        %v2321 = vpop.f32.mrf.mxu0
        %v2322 = vadd.f32 0.0, %v2321
        %v2323 = vpop.f32.mrf.mxu0
        %v2324 = vpop.f32.mrf.mxu0
        %v2325 = vpop.f32.mrf.mxu0
        %2326 = vdwg.mxu0
        %v2327 = vadd.f32 %v2217, %v2322
        %v2328 = vld [vmem:[%s13] sm:$0x1]
        %v2330 = vlaneseq
        %v2331 = vshrl.u32 %v2330, 7
        %v2332 = vsub.s32 0, %v2331
        %v2333 = vrot.slane %v2328, %v2332
        %v2335 = vadd.f32 %v2327, %v2333
        %2336 = vst [vmem:[%s502] sm:$0xff] %v2335
        %s2337 = sand.u32 %s352, 1
        %s2338 = scalar_lea.sflag [#allocation4], %s2337
        %s2339 = sand.u32 %s352, 1
        %s2340 = smul.addr %s2339, 8
        %s2341 = scalar_lea.vmem [#allocation3], %s2340
        // Predicated region
        $region77: #{news_encoder_forward.1} parent=75 // pred_check
          %p2342 = pneg %p362
        $region78: #{news_encoder_forward.1} parent=75 // pred_check_branch
          %2344 = sbr.rel (%p2342) target = $region80
        $region79: #{news_encoder_forward.1} parent=75 // pred_region
          %s2346 = ssub.s32 128, 128
          %2347 = vsyncadd %s2338, %s2346
          %s2348 = smul.addr %s30, 128
          %s2349 = scalar_lea.hbm %s14, %s2348
          %s2351 = sshll.u32 %s2341, 4
          %s2352 = int_to_ptr.vmem [resolvable:$true] %s2351
          %2354 = dma.vmem_to_hbm [thread:$0]  %s2352, 128, %s2349, %s2338
        $region80: #{news_encoder_forward.1} parent=75 // pred_fallthru
          _
      $region76: #{news_encoder_forward.1} parent=5 // pred_fallthru
        _
      %p2355 = scmp.le.s32.totalorder 2, %s25
      // Predicated region
      $region81: #{news_encoder_forward.1} parent=5 // pred_check
        %p2356 = pneg %p2355
      $region82: #{news_encoder_forward.1} parent=5 // pred_check_branch
        %2358 = sbr.rel (%p2356) target = $region84
      $region83: #{news_encoder_forward.1} parent=5 // pred_region
        %s2359 = ssub.s32 %s25, 2
        // Predicated region
        $region85: #{news_encoder_forward.1} parent=83 // pred_check
          %p2360 = pneg %p368
        $region86: #{news_encoder_forward.1} parent=83 // pred_check_branch
          %2362 = sbr.rel (%p2360) target = $region88
        $region87: #{news_encoder_forward.1} parent=83 // pred_region
          %s2363 = sand.u32 %s353, 1
          %s2364 = scalar_lea.sflag [#allocation4], %s2363
          %s2365 = sand.u32 %s353, 1
          %s2366 = smul.addr %s2365, 8
          %s2367 = scalar_lea.vmem [#allocation3], %s2366
          %2368 = dma.done %s2364, 128
        $region88: #{news_encoder_forward.1} parent=83 // pred_fallthru
          _
      $region84: #{news_encoder_forward.1} parent=5 // pred_fallthru
        _
    $region6: #{news_encoder_forward.1} parent=1 // loop_footer
      %s29 = sadd.s32 1, %s25
    $region7: #{news_encoder_forward.1} parent=1 // loop_footer_branch
      %24 = sbr.rel target = $region3
    $region8: #{news_encoder_forward.1} parent=1 // loop_exit
      _
    %2369 = vsyncpa [#allocation4], 1
    %s2370 = scalar_lea.sflag [#allocation4], 1
    %2371 = vsyncpa %s2370, 1

</llo_original>
